<compile_context>
chip_gen: v7x
topology: tpu7x:2x2x1
jax: 0.10.0
libtpu: 0.0.40
codegen_flags: <defaults>
</compile_context>

<pallas_src>
import jax
import jax.numpy as jnp
from jax.experimental import pallas as pl
from jax.experimental.pallas import tpu as pltpu


IN_PLANES = 384     # self.in_planes in DG_Net
PATCH = 8
LANE = 128          # TPU lane width; classifier output padded to this


def _round_up(a, m):
    return (a + m - 1) // m * m


# ----------------------------------------------------------------------------
# Kernel 1: tiled matmul + bias
#   * f32 activations/weights arrive in VMEM and are cast to bf16 right before
#     the MXU dot (no wrapper-side cast pass over HBM).
#   * f32 accumulation, bf16 output writeback.
# ----------------------------------------------------------------------------
def _matmul_bias_kernel(x_ref, w_ref, b_ref, o_ref):
    # x: [tm, K] f32, w: [K, N] f32, b: [1, N] f32 -> o: [tm, N] bf16
    acc = jnp.dot(
        x_ref[...].astype(jnp.bfloat16),
        w_ref[...].astype(jnp.bfloat16),
        preferred_element_type=jnp.float32,
    ) + b_ref[...]
    o_ref[...] = acc.astype(o_ref.dtype)


def pallas_linear(x, w, b, *, tm_max=1024):
    """y = x @ w + b (bf16 output), tiled over M.

    x: [M, K] f32, w: [K, N] f32, b: [N] f32.
    tm_max=1024 (multiple of 256 for the 256-wide MXU on v6e/v7x); with
    K <= ~2K the double-buffered activation block plus the single-buffered
    weight stay well under the default 32 MiB scoped VMEM on every chip.
    """
    M, K = x.shape
    Kw, N = w.shape
    assert K == Kw
    tm = min(tm_max, _round_up(M, 16))
    M_pad = _round_up(M, tm)
    x_p = x if M_pad == M else jnp.pad(x, ((0, M_pad - M), (0, 0)))
    const_map = lambda i: (0, 0)
    out = pl.pallas_call(
        _matmul_bias_kernel,
        grid=(M_pad // tm,),
        out_shape=jax.ShapeDtypeStruct((M_pad, N), jnp.bfloat16),
        in_specs=[
            pl.BlockSpec((tm, K), lambda i: (i, 0)),
            # Constant index_map across the grid -> single-buffered (no second
            # K x N buffer, no per-step revisit bookkeeping).
            pl.BlockSpec((K, N), const_map, pipeline_mode=pl.Buffered(1)),
            pl.BlockSpec((1, N), const_map, pipeline_mode=pl.Buffered(1)),
        ],
        out_specs=pl.BlockSpec((tm, N), lambda i: (i, 0)),
        compiler_params=pltpu.CompilerParams(
            dimension_semantics=("parallel",)),
    )(x_p, w, b.reshape(1, N))
    return out[:M] if M_pad != M else out


# ----------------------------------------------------------------------------
# Kernel 2: fused DG_Net head
#   part_layer (token-wise Linear) on the cls tokens of both sequences,
#   both KL(batchmean) terms (+ averaging), both BatchNorm1d(train) calls with
#   independent batch statistics (iota-masked, no in-VMEM slicing/concat), and
#   the bias-free classifier with a lane-dense (128-padded) output — all in
#   ONE pallas_call.
# ----------------------------------------------------------------------------
def _dg_head_kernel(x_ref, w1_ref, b1_ref, g_ref, beta_ref, wc_ref,
                    feat_ref, score_ref, kl_ref):
    # x_ref   : [2B, D] bf16 — cls tokens (rows 0..B-1 clean, B..2B-1 noisy).
    #           Also the part_layer input: with the token-wise synthetic
    #           part_layer, part_layer(mixed_seq)[:, 0] == layer1(cls token).
    # w1/b1   : layer1 weight [D, D] f32 / bias [1, D] f32
    # g/beta  : BatchNorm affine params [1, D] f32
    # wc_ref  : classifier weight padded to [D, 128] f32 (bias-free)
    x_bf = x_ref[...]                                # [2B, D] bf16 (MXU path)
    x = x_bf.astype(jnp.float32)                     # [2B, D] f32  (VPU path)
    B2, D = x.shape
    B = B2 // 2

    # --- part_layer (model.layer1, synthetic token-wise Linear) --------------
    feat = jnp.dot(
        x_bf, w1_ref[...].astype(jnp.bfloat16),
        preferred_element_type=jnp.float32,
    ) + b1_ref[...]                                  # [2B, D] f32
    feat_ref[...] = feat

    # --- KL(batchmean)(log_softmax(feat), softmax(x)), averaged over halves --
    # (sum_clean/B + sum_noise/B) / 2 == total_sum / (2B), so no half-split
    # reductions are needed.
    f_shift = feat - jnp.max(feat, axis=1, keepdims=True)
    log_p = f_shift - jnp.log(jnp.sum(jnp.exp(f_shift), axis=1, keepdims=True))

    t_shift = x - jnp.max(x, axis=1, keepdims=True)
    t_exp = jnp.exp(t_shift)
    t_sum = jnp.sum(t_exp, axis=1, keepdims=True)
    t_sm = t_exp / t_sum                             # exact softmax (KL target)
    log_t = t_shift - jnp.log(t_sum)

    kl_elem = t_sm * (log_t - log_p)                 # [2B, D]
    kl_ref[0, 0] = jnp.sum(kl_elem) * (1.0 / B2)     # scalar -> SMEM output

    # --- BatchNorm1d (training mode): separate batch stats per half ----------
    # Per-half statistics via an iota row mask over the intact [2B, D] slab
    # (no in-kernel slice/concat copies).
    # TODO(synk): running_mean / running_var are not tracked (training branch
    # output only; biased-variance normalization matches PyTorch).
    row = jax.lax.broadcasted_iota(jnp.int32, (B2, D), 0)
    is_clean = row < B                               # [2B, D] bool
    inv_b = 1.0 / B
    zero = jnp.zeros_like(x)

    sum_c = jnp.sum(jnp.where(is_clean, x, zero), axis=0, keepdims=True)
    sum_n = jnp.sum(jnp.where(is_clean, zero, x), axis=0, keepdims=True)
    mean = jnp.where(is_clean, sum_c * inv_b, sum_n * inv_b)    # [2B, D]
    xm = x - mean
    sq = xm * xm
    var_c = jnp.sum(jnp.where(is_clean, sq, zero), axis=0, keepdims=True) * inv_b
    var_n = jnp.sum(jnp.where(is_clean, zero, sq), axis=0, keepdims=True) * inv_b
    var = jnp.where(is_clean, var_c, var_n)                     # [2B, D]

    bn = xm * jax.lax.rsqrt(var + 1e-5) * g_ref[...] + beta_ref[...]

    # --- classifier_final1 (bias-free), lane-dense padded output -------------
    score_ref[...] = jnp.dot(
        bn.astype(jnp.bfloat16),
        wc_ref[...].astype(jnp.bfloat16),
        preferred_element_type=jnp.float32,
    )                                                # [2B, 128]


def pallas_dg_head(x_cls, w1, b1, gamma, beta, cls_w_pad):
    B2, D = x_cls.shape
    NPAD = cls_w_pad.shape[1]
    feat, score_pad, kl = pl.pallas_call(
        _dg_head_kernel,
        grid=(1,),
        out_shape=(
            jax.ShapeDtypeStruct((B2, D), jnp.float32),
            jax.ShapeDtypeStruct((B2, NPAD), jnp.float32),
            jax.ShapeDtypeStruct((1, 1), jnp.float32),
        ),
        in_specs=[
            pl.BlockSpec((B2, D), lambda i: (0, 0)),
            pl.BlockSpec((D, D), lambda i: (0, 0)),
            pl.BlockSpec((1, D), lambda i: (0, 0)),
            pl.BlockSpec((1, D), lambda i: (0, 0)),
            pl.BlockSpec((1, D), lambda i: (0, 0)),
            pl.BlockSpec((D, NPAD), lambda i: (0, 0)),
        ],
        out_specs=(
            pl.BlockSpec((B2, D), lambda i: (0, 0)),
            pl.BlockSpec((B2, NPAD), lambda i: (0, 0)),
            # Scalar KL loss goes to SMEM (cheaper than a lane-masked VMEM tile).
            pl.BlockSpec((1, 1), lambda i: (0, 0),
                         memory_space=pltpu.MemorySpace.SMEM),
        ),
        # Single-shot head: whole working set (~10 f32 [2B, D] slabs) resident.
        # 64 MiB scoped limit covers 2B up to ~2K rows on every chip incl. v7x.
        # TODO(synk): batch-tile with a two-pass BN for larger batches.
        compiler_params=pltpu.CompilerParams(vmem_limit_bytes=64 << 20),
    )(
        x_cls,
        w1,
        b1.reshape(1, D),
        gamma.reshape(1, D),
        beta.reshape(1, D),
        cls_w_pad,
    )
    return feat, score_pad, kl[0, 0]


# ----------------------------------------------------------------------------
# Synthetic backbone / model pieces (deterministic parameters)
# ----------------------------------------------------------------------------
def init_params(key, in_ch, num_classes):
    k = jax.random.split(key, 6)
    patch_dim = in_ch * PATCH * PATCH
    n_pad = _round_up(num_classes, LANE)
    cls_w = jax.random.normal(k[3], (IN_PLANES, num_classes), jnp.float32) * 0.001
    params = {
        # backbone E: patch embedding + class token
        "embed_w": jax.random.normal(k[0], (patch_dim, IN_PLANES), jnp.float32)
        * (2.0 / patch_dim) ** 0.5,
        "embed_b": jnp.zeros((IN_PLANES,), jnp.float32),
        "cls_token": jax.random.normal(k[1], (1, 1, IN_PLANES), jnp.float32) * 0.02,
        # model.layer1 (part_layer): token-wise Linear(D, D)
        "layer1_w": jax.random.normal(k[2], (IN_PLANES, IN_PLANES), jnp.float32)
        * (2.0 / IN_PLANES) ** 0.5,
        "layer1_b": jnp.zeros((IN_PLANES,), jnp.float32),
        # classifier_final1: Linear(384, num_classes, bias=False), std=0.001,
        # lane-padded to 128 output columns (extra columns are zero, sliced off).
        "cls_w_pad": jnp.pad(cls_w, ((0, 0), (0, n_pad - num_classes))),
        # BN_fin1: weight=1, bias=0 (kaiming init for BatchNorm)
        "bn_gamma": jnp.ones((IN_PLANES,), jnp.float32),
        "bn_beta": jnp.zeros((IN_PLANES,), jnp.float32),
    }
    return params


def backbone_E(params, x):
    """Synthetic E: patch-embed NCHW images to tokens, prepend a class token.

    The class token mean-pools the patch tokens so downstream features (KL,
    BN, scores) genuinely depend on the image content.
    """
    B, C, H, W = x.shape
    # [B, C, H, W] -> non-overlapping PATCHxPATCH patches -> [B, Np, C*P*P]
    # TODO(synk): at production image sizes this 6-D transpose should be folded
    # into the embed kernel (strided DMA / in-VMEM reorder) instead of an XLA
    # transpose that round-trips the activation through HBM.
    x = x.reshape(B, C, H // PATCH, PATCH, W // PATCH, PATCH)
    x = jnp.transpose(x, (0, 2, 4, 1, 3, 5))                 # [B, Hp, Wp, C, P, P]
    patches = x.reshape(B, (H // PATCH) * (W // PATCH), C * PATCH * PATCH)
    Np = patches.shape[1]
    tok = pallas_linear(
        patches.reshape(B * Np, C * PATCH * PATCH),
        params["embed_w"],
        params["embed_b"],
    ).reshape(B, Np, IN_PLANES)                               # [B, Np, 384] bf16
    pooled = jnp.mean(tok.astype(jnp.float32), axis=1, keepdims=True)
    cls = (params["cls_token"] + pooled).astype(jnp.bfloat16)  # [B, 1, 384]
    return jnp.concatenate([cls, tok], axis=1)                 # [B, Np+1, 384]


# ----------------------------------------------------------------------------
# DG_Net forward (training branch)
# ----------------------------------------------------------------------------
def dg_net_forward(params, x, x_noise, num_classes):
    B = x.shape[0]

    # Batch the clean and noisy paths through ONE embedding matmul.
    x_both = jnp.concatenate([x, x_noise], axis=0)            # [2B, C, H, W]
    global_both = backbone_E(params, x_both)                  # [2B, N, 384] bf16
    global_x, global_x_noise = global_both[:B], global_both[B:]

    # --- KL_defen token mixing (mirrors the PyTorch code) --------------------
    # new_x_feat1       = cat(cls_clean, noisy patch tokens)
    # new_x_feat1_noise = cat(cls_noisy, <empty slice>)          (as in PyTorch)
    # With the synthetic token-wise part_layer, part_layer(seq)[:, 0] depends
    # only on token 0, and token 0 of the mixed sequences is exactly the
    # clean / noisy cls token — so x_cls alone feeds the fused head (the old
    # separate `lin_in` input was bit-identical and has been dropped).
    x_cls = jnp.concatenate(
        [global_x[:, 0], global_x_noise[:, 0]], axis=0)           # [2B, 384] bf16

    # --- fused head: layer1 + KL pair + BN1d(train) x2 + classifier ----------
    feat, score_pad, kl_loss = pallas_dg_head(
        x_cls,
        params["layer1_w"], params["layer1_b"],
        params["bn_gamma"], params["bn_beta"],
        params["cls_w_pad"],
    )

    feat1, feat1_noise = feat[:B], feat[B:]
    score_fin1 = score_pad[:B, :num_classes]
    score_fin1_noise = score_pad[B:, :num_classes]
    x_1 = x_cls[:B].astype(jnp.float32)
    x_1_noise = x_cls[B:].astype(jnp.float32)

    feat_list = [x_1, x_1_noise, feat1, feat1_noise]
    score_list = [score_fin1, score_fin1_noise]
    return feat_list, score_list, kl_loss


# ----------------------------------------------------------------------------
if __name__ == "__main__":
    key = jax.random.PRNGKey(0)
    k_param, k_x, k_xn = jax.random.split(key, 3)

    B, C, H, W = 2, 4, 16, 16
    NUM_CLASSES = 16

    params = init_params(k_param, C, NUM_CLASSES)
    x = jax.random.normal(k_x, (B, C, H, W), jnp.float32)
    x_noise = x + 0.1 * jax.random.normal(k_xn, (B, C, H, W), jnp.float32)

    forward = jax.jit(dg_net_forward, static_argnums=(3,))
    feat_list, score_list, kl_loss = forward(params, x, x_noise, NUM_CLASSES)
    jax.block_until_ready((feat_list, score_list, kl_loss))

    assert feat_list[0].shape == (B, IN_PLANES)
    assert feat_list[2].shape == (B, IN_PLANES)
    assert score_list[0].shape == (B, NUM_CLASSES)
    assert kl_loss.shape == ()
    assert bool(jnp.isfinite(kl_loss))

    print("KERNEL_OK")
</pallas_src>

<mosaic_0001>
module attributes {stable_mosaic.version = 11 : i64} {
  func.func @_dg_head_kernel(%arg0: i32, %arg1: memref<4x384xbf16, #tpu.memory_space<vmem>>, %arg2: memref<384x384xf32, #tpu.memory_space<vmem>>, %arg3: memref<1x384xf32, #tpu.memory_space<vmem>>, %arg4: memref<1x384xf32, #tpu.memory_space<vmem>>, %arg5: memref<1x384xf32, #tpu.memory_space<vmem>>, %arg6: memref<384x128xf32, #tpu.memory_space<vmem>>, %arg7: memref<4x384xf32, #tpu.memory_space<vmem>>, %arg8: memref<4x128xf32, #tpu.memory_space<vmem>>, %arg9: memref<1x1xf32, #tpu.memory_space<smem>>) attributes {dimension_semantics = [#tpu.dimension_semantics<arbitrary>], iteration_bounds = array<i64: 1>, scalar_prefetch = 0 : i64, scratch_operands = 0 : i64, tpu.core_type = #tpu.core_type<tc>, window_params = [{pipeline_mode = #tpu.pipeline_mode<synchronous>, transform_indices = @transform_0, window_bounds = array<i64: 4, 384>}, {pipeline_mode = #tpu.pipeline_mode<synchronous>, transform_indices = @transform_1, window_bounds = array<i64: 384, 384>}, {pipeline_mode = #tpu.pipeline_mode<synchronous>, transform_indices = @transform_2, window_bounds = array<i64: 1, 384>}, {pipeline_mode = #tpu.pipeline_mode<synchronous>, transform_indices = @transform_3, window_bounds = array<i64: 1, 384>}, {pipeline_mode = #tpu.pipeline_mode<synchronous>, transform_indices = @transform_4, window_bounds = array<i64: 1, 384>}, {pipeline_mode = #tpu.pipeline_mode<synchronous>, transform_indices = @transform_5, window_bounds = array<i64: 384, 128>}, {pipeline_mode = #tpu.pipeline_mode<synchronous>, transform_indices = @transform_6, window_bounds = array<i64: 4, 384>}, {pipeline_mode = #tpu.pipeline_mode<synchronous>, transform_indices = @transform_7, window_bounds = array<i64: 4, 128>}, {transform_indices = @transform_8, window_bounds = array<i64: 1, 1>}]} {
    %c0 = arith.constant 0 : index
    %c0_0 = arith.constant 0 : index
    %0 = vector.load %arg1[%c0, %c0_0] : memref<4x384xbf16, #tpu.memory_space<vmem>>, vector<4x384xbf16>
    %1 = arith.extf %0 : vector<4x384xbf16> to vector<4x384xf32>
    %c0_1 = arith.constant 0 : index
    %c0_2 = arith.constant 0 : index
    %2 = vector.load %arg2[%c0_1, %c0_2] : memref<384x384xf32, #tpu.memory_space<vmem>>, vector<384x384xf32>
    %3 = arith.truncf %2 : vector<384x384xf32> to vector<384x384xbf16>
    %cst = arith.constant dense<0.000000e+00> : vector<4x384xf32>
    %4 = tpu.matmul %0, %3, %cst {dimension_numbers = #tpu.dot_dimension_numbers<[1], [0], [0], [1], [0, 0, 1, 1], [], []>} : vector<4x384xbf16>, vector<384x384xbf16>, vector<4x384xf32> -> vector<4x384xf32>
    %c0_3 = arith.constant 0 : index
    %c0_4 = arith.constant 0 : index
    %5 = vector.load %arg3[%c0_3, %c0_4] : memref<1x384xf32, #tpu.memory_space<vmem>>, vector<1x384xf32>
    %6 = vector.broadcast %5 : vector<1x384xf32> to vector<4x384xf32>
    %7 = arith.addf %4, %6 : vector<4x384xf32>
    %c0_5 = arith.constant 0 : index
    %c0_6 = arith.constant 0 : index
    %8 = vector.load %arg7[%c0_5, %c0_6] : memref<4x384xf32, #tpu.memory_space<vmem>>, vector<4x384xf32>
    tpu.vector_store %arg7[%c0_5, %c0_6], %7 {strides = array<i32>} : memref<4x384xf32, #tpu.memory_space<vmem>>, vector<4x384xf32>,
    %cst_7 = arith.constant dense<0xFF800000> : vector<4xf32>
    %9 = vector.multi_reduction <maximumf>, %7, %cst_7 [1] : vector<4x384xf32> to vector<4xf32>
    %10 = vector.shape_cast %9 : vector<4xf32> to vector<4x1xf32>
    %11 = vector.broadcast %10 : vector<4x1xf32> to vector<4x384xf32>
    %12 = arith.subf %7, %11 : vector<4x384xf32>
    %13 = math.exp %12 : vector<4x384xf32>
    %cst_8 = arith.constant dense<0.000000e+00> : vector<4xf32>
    %14 = vector.multi_reduction <add>, %13, %cst_8 [1] : vector<4x384xf32> to vector<4xf32>
    %15 = vector.shape_cast %14 : vector<4xf32> to vector<4x1xf32>
    %16 = math.log %15 : vector<4x1xf32>
    %17 = vector.broadcast %16 : vector<4x1xf32> to vector<4x384xf32>
    %18 = arith.subf %12, %17 : vector<4x384xf32>
    %cst_9 = arith.constant dense<0xFF800000> : vector<4xf32>
    %19 = vector.multi_reduction <maximumf>, %1, %cst_9 [1] : vector<4x384xf32> to vector<4xf32>
    %20 = vector.shape_cast %19 : vector<4xf32> to vector<4x1xf32>
    %21 = vector.broadcast %20 : vector<4x1xf32> to vector<4x384xf32>
    %22 = arith.subf %1, %21 : vector<4x384xf32>
    %23 = math.exp %22 : vector<4x384xf32>
    %cst_10 = arith.constant dense<0.000000e+00> : vector<4xf32>
    %24 = vector.multi_reduction <add>, %23, %cst_10 [1] : vector<4x384xf32> to vector<4xf32>
    %25 = vector.shape_cast %24 : vector<4xf32> to vector<4x1xf32>
    %26 = vector.broadcast %25 : vector<4x1xf32> to vector<4x384xf32>
    %27 = arith.divf %23, %26 : vector<4x384xf32>
    %28 = math.log %25 : vector<4x1xf32>
    %29 = vector.broadcast %28 : vector<4x1xf32> to vector<4x384xf32>
    %30 = arith.subf %22, %29 : vector<4x384xf32>
    %31 = arith.subf %30, %18 : vector<4x384xf32>
    %32 = arith.mulf %27, %31 : vector<4x384xf32>
    %33 = vector.shape_cast %32 : vector<4x384xf32> to vector<1x4x384xf32>
    %cst_11 = arith.constant dense<0.000000e+00> : vector<1xf32>
    %34 = vector.multi_reduction <add>, %33, %cst_11 [1, 2] : vector<1x4x384xf32> to vector<1xf32>
    %35 = vector.shape_cast %34 : vector<1xf32> to vector<1x1x1xf32>
    %36 = vector.extract %35[0, 0, 0] : f32 from vector<1x1x1xf32>
    %cst_12 = arith.constant 2.500000e-01 : f32
    %37 = arith.mulf %36, %cst_12 : f32
    %c0_13 = arith.constant 0 : index
    %c0_14 = arith.constant 0 : index
    %38 = memref.load %arg9[%c0_13, %c0_14] : memref<1x1xf32, #tpu.memory_space<smem>>
    memref.store %37, %arg9[%c0_13, %c0_14] : memref<1x1xf32, #tpu.memory_space<smem>>
    %39 = tpu.iota {dimensions = array<i32: 0>} : vector<4x384xi32>
    %c2_i32 = arith.constant 2 : i32
    %40 = vector.broadcast %c2_i32 : i32 to vector<4x384xi32>
    %41 = arith.cmpi slt, %39, %40 : vector<4x384xi32>
    %cst_15 = arith.constant 0.000000e+00 : f32
    %42 = vector.broadcast %cst_15 : f32 to vector<4x384xf32>
    %43 = arith.select %41, %1, %42 : vector<4x384xi1>, vector<4x384xf32>
    %cst_16 = arith.constant dense<0.000000e+00> : vector<384xf32>
    %44 = vector.multi_reduction <add>, %43, %cst_16 [0] : vector<4x384xf32> to vector<384xf32>
    %45 = vector.shape_cast %44 : vector<384xf32> to vector<1x384xf32>
    %46 = arith.select %41, %42, %1 : vector<4x384xi1>, vector<4x384xf32>
    %cst_17 = arith.constant dense<0.000000e+00> : vector<384xf32>
    %47 = vector.multi_reduction <add>, %46, %cst_17 [0] : vector<4x384xf32> to vector<384xf32>
    %48 = vector.shape_cast %47 : vector<384xf32> to vector<1x384xf32>
    %cst_18 = arith.constant 5.000000e-01 : f32
    %49 = vector.broadcast %cst_18 : f32 to vector<1x384xf32>
    %50 = arith.mulf %45, %49 : vector<1x384xf32>
    %cst_19 = arith.constant 5.000000e-01 : f32
    %51 = vector.broadcast %cst_19 : f32 to vector<1x384xf32>
    %52 = arith.mulf %48, %51 : vector<1x384xf32>
    %53 = vector.shape_cast %50 : vector<1x384xf32> to vector<1x384xf32>
    %54 = vector.broadcast %53 : vector<1x384xf32> to vector<4x384xf32>
    %55 = vector.shape_cast %52 : vector<1x384xf32> to vector<1x384xf32>
    %56 = vector.broadcast %55 : vector<1x384xf32> to vector<4x384xf32>
    %57 = arith.select %41, %54, %56 : vector<4x384xi1>, vector<4x384xf32>
    %58 = arith.subf %1, %57 : vector<4x384xf32>
    %59 = arith.mulf %58, %58 : vector<4x384xf32>
    %60 = arith.select %41, %59, %42 : vector<4x384xi1>, vector<4x384xf32>
    %cst_20 = arith.constant dense<0.000000e+00> : vector<384xf32>
    %61 = vector.multi_reduction <add>, %60, %cst_20 [0] : vector<4x384xf32> to vector<384xf32>
    %62 = vector.shape_cast %61 : vector<384xf32> to vector<1x384xf32>
    %cst_21 = arith.constant 5.000000e-01 : f32
    %63 = vector.broadcast %cst_21 : f32 to vector<1x384xf32>
    %64 = arith.mulf %62, %63 : vector<1x384xf32>
    %65 = arith.select %41, %42, %59 : vector<4x384xi1>, vector<4x384xf32>
    %cst_22 = arith.constant dense<0.000000e+00> : vector<384xf32>
    %66 = vector.multi_reduction <add>, %65, %cst_22 [0] : vector<4x384xf32> to vector<384xf32>
    %67 = vector.shape_cast %66 : vector<384xf32> to vector<1x384xf32>
    %cst_23 = arith.constant 5.000000e-01 : f32
    %68 = vector.broadcast %cst_23 : f32 to vector<1x384xf32>
    %69 = arith.mulf %67, %68 : vector<1x384xf32>
    %70 = vector.shape_cast %64 : vector<1x384xf32> to vector<1x384xf32>
    %71 = vector.broadcast %70 : vector<1x384xf32> to vector<4x384xf32>
    %72 = vector.shape_cast %69 : vector<1x384xf32> to vector<1x384xf32>
    %73 = vector.broadcast %72 : vector<1x384xf32> to vector<4x384xf32>
    %74 = arith.select %41, %71, %73 : vector<4x384xi1>, vector<4x384xf32>
    %cst_24 = arith.constant 9.99999974E-6 : f32
    %75 = vector.broadcast %cst_24 : f32 to vector<4x384xf32>
    %76 = arith.addf %74, %75 : vector<4x384xf32>
    %77 = math.rsqrt %76 : vector<4x384xf32>
    %78 = arith.mulf %58, %77 : vector<4x384xf32>
    %c0_25 = arith.constant 0 : index
    %c0_26 = arith.constant 0 : index
    %79 = vector.load %arg4[%c0_25, %c0_26] : memref<1x384xf32, #tpu.memory_space<vmem>>, vector<1x384xf32>
    %80 = vector.broadcast %79 : vector<1x384xf32> to vector<4x384xf32>
    %81 = arith.mulf %78, %80 : vector<4x384xf32>
    %c0_27 = arith.constant 0 : index
    %c0_28 = arith.constant 0 : index
    %82 = vector.load %arg5[%c0_27, %c0_28] : memref<1x384xf32, #tpu.memory_space<vmem>>, vector<1x384xf32>
    %83 = vector.broadcast %82 : vector<1x384xf32> to vector<4x384xf32>
    %84 = arith.addf %81, %83 : vector<4x384xf32>
    %85 = arith.truncf %84 : vector<4x384xf32> to vector<4x384xbf16>
    %c0_29 = arith.constant 0 : index
    %c0_30 = arith.constant 0 : index
    %86 = vector.load %arg6[%c0_29, %c0_30] : memref<384x128xf32, #tpu.memory_space<vmem>>, vector<384x128xf32>
    %87 = arith.truncf %86 : vector<384x128xf32> to vector<384x128xbf16>
    %cst_31 = arith.constant dense<0.000000e+00> : vector<4x128xf32>
    %88 = tpu.matmul %85, %87, %cst_31 {dimension_numbers = #tpu.dot_dimension_numbers<[1], [0], [0], [1], [0, 0, 1, 1], [], []>} : vector<4x384xbf16>, vector<384x128xbf16>, vector<4x128xf32> -> vector<4x128xf32>
    %c0_32 = arith.constant 0 : index
    %c0_33 = arith.constant 0 : index
    %89 = vector.load %arg8[%c0_32, %c0_33] : memref<4x128xf32, #tpu.memory_space<vmem>>, vector<4x128xf32>
    tpu.vector_store %arg8[%c0_32, %c0_33], %88 {strides = array<i32>} : memref<4x128xf32, #tpu.memory_space<vmem>>, vector<4x128xf32>,
    return
  }
  func.func @transform_0(%arg0: i32) -> (i32, i32) {
    %c0_i32 = arith.constant 0 : i32
    %c0_i32_0 = arith.constant 0 : i32
    %c0_i32_1 = arith.constant 0 : i32
    return %c0_i32, %c0_i32_0 : i32, i32
  }
  func.func @transform_1(%arg0: i32) -> (i32, i32) {
    %c0_i32 = arith.constant 0 : i32
    %c0_i32_0 = arith.constant 0 : i32
    %c0_i32_1 = arith.constant 0 : i32
    return %c0_i32, %c0_i32_0 : i32, i32
  }
  func.func @transform_2(%arg0: i32) -> (i32, i32) {
    %c0_i32 = arith.constant 0 : i32
    %c0_i32_0 = arith.constant 0 : i32
    %c0_i32_1 = arith.constant 0 : i32
    return %c0_i32, %c0_i32_0 : i32, i32
  }
  func.func @transform_3(%arg0: i32) -> (i32, i32) {
    %c0_i32 = arith.constant 0 : i32
    %c0_i32_0 = arith.constant 0 : i32
    %c0_i32_1 = arith.constant 0 : i32
    return %c0_i32, %c0_i32_0 : i32, i32
  }
  func.func @transform_4(%arg0: i32) -> (i32, i32) {
    %c0_i32 = arith.constant 0 : i32
    %c0_i32_0 = arith.constant 0 : i32
    %c0_i32_1 = arith.constant 0 : i32
    return %c0_i32, %c0_i32_0 : i32, i32
  }
  func.func @transform_5(%arg0: i32) -> (i32, i32) {
    %c0_i32 = arith.constant 0 : i32
    %c0_i32_0 = arith.constant 0 : i32
    %c0_i32_1 = arith.constant 0 : i32
    return %c0_i32, %c0_i32_0 : i32, i32
  }
  func.func @transform_6(%arg0: i32) -> (i32, i32) {
    %c0_i32 = arith.constant 0 : i32
    %c0_i32_0 = arith.constant 0 : i32
    %c0_i32_1 = arith.constant 0 : i32
    return %c0_i32, %c0_i32_0 : i32, i32
  }
  func.func @transform_7(%arg0: i32) -> (i32, i32) {
    %c0_i32 = arith.constant 0 : i32
    %c0_i32_0 = arith.constant 0 : i32
    %c0_i32_1 = arith.constant 0 : i32
    return %c0_i32, %c0_i32_0 : i32, i32
  }
  func.func @transform_8(%arg0: i32) -> (i32, i32) {
    %c0_i32 = arith.constant 0 : i32
    %c0_i32_0 = arith.constant 0 : i32
    %c0_i32_1 = arith.constant 0 : i32
    return %c0_i32, %c0_i32_0 : i32, i32
  }
}

module attributes {stable_mosaic.version = 11 : i64} {
  func.func @_matmul_bias_kernel(%arg0: i32, %arg1: memref<16x256xf32, #tpu.memory_space<vmem>>, %arg2: memref<256x384xf32, #tpu.memory_space<vmem>>, %arg3: memref<1x384xf32, #tpu.memory_space<vmem>>, %arg4: memref<16x384xbf16, #tpu.memory_space<vmem>>) attributes {dimension_semantics = [#tpu.dimension_semantics<parallel>], iteration_bounds = array<i64: 1>, scalar_prefetch = 0 : i64, scratch_operands = 0 : i64, tpu.core_type = #tpu.core_type<tc>, window_params = [{transform_indices = @transform_0, window_bounds = array<i64: 16, 256>}, {pipeline_mode = #tpu.pipeline_mode<synchronous>, transform_indices = @transform_1, window_bounds = array<i64: 256, 384>}, {pipeline_mode = #tpu.pipeline_mode<synchronous>, transform_indices = @transform_2, window_bounds = array<i64: 1, 384>}, {transform_indices = @transform_3, window_bounds = array<i64: 16, 384>}]} {
    %c0 = arith.constant 0 : index
    %c0_0 = arith.constant 0 : index
    %0 = vector.load %arg1[%c0, %c0_0] : memref<16x256xf32, #tpu.memory_space<vmem>>, vector<16x256xf32>
    %1 = arith.truncf %0 : vector<16x256xf32> to vector<16x256xbf16>
    %c0_1 = arith.constant 0 : index
    %c0_2 = arith.constant 0 : index
    %2 = vector.load %arg2[%c0_1, %c0_2] : memref<256x384xf32, #tpu.memory_space<vmem>>, vector<256x384xf32>
    %3 = arith.truncf %2 : vector<256x384xf32> to vector<256x384xbf16>
    %cst = arith.constant dense<0.000000e+00> : vector<16x384xf32>
    %4 = tpu.matmul %1, %3, %cst {dimension_numbers = #tpu.dot_dimension_numbers<[1], [0], [0], [1], [0, 0, 1, 1], [], []>} : vector<16x256xbf16>, vector<256x384xbf16>, vector<16x384xf32> -> vector<16x384xf32>
    %c0_3 = arith.constant 0 : index
    %c0_4 = arith.constant 0 : index
    %5 = vector.load %arg3[%c0_3, %c0_4] : memref<1x384xf32, #tpu.memory_space<vmem>>, vector<1x384xf32>
    %6 = vector.broadcast %5 : vector<1x384xf32> to vector<16x384xf32>
    %7 = arith.addf %4, %6 : vector<16x384xf32>
    %8 = arith.truncf %7 : vector<16x384xf32> to vector<16x384xbf16>
    %c0_5 = arith.constant 0 : index
    %c0_6 = arith.constant 0 : index
    %9 = vector.load %arg4[%c0_5, %c0_6] : memref<16x384xbf16, #tpu.memory_space<vmem>>, vector<16x384xbf16>
    tpu.vector_store %arg4[%c0_5, %c0_6], %8 {strides = array<i32>} : memref<16x384xbf16, #tpu.memory_space<vmem>>, vector<16x384xbf16>,
    return
  }
  func.func @transform_0(%arg0: i32) -> (i32, i32) {
    %c0_i32 = arith.constant 0 : i32
    %c0_i32_0 = arith.constant 0 : i32
    return %arg0, %c0_i32 : i32, i32
  }
  func.func @transform_1(%arg0: i32) -> (i32, i32) {
    %c0_i32 = arith.constant 0 : i32
    %c0_i32_0 = arith.constant 0 : i32
    %c0_i32_1 = arith.constant 0 : i32
    return %c0_i32, %c0_i32_0 : i32, i32
  }
  func.func @transform_2(%arg0: i32) -> (i32, i32) {
    %c0_i32 = arith.constant 0 : i32
    %c0_i32_0 = arith.constant 0 : i32
    %c0_i32_1 = arith.constant 0 : i32
    return %c0_i32, %c0_i32_0 : i32, i32
  }
  func.func @transform_3(%arg0: i32) -> (i32, i32) {
    %c0_i32 = arith.constant 0 : i32
    %c0_i32_0 = arith.constant 0 : i32
    return %arg0, %c0_i32 : i32, i32
  }
}

</mosaic_0001>

<llo_original>
// kernel: dg_net_forward.2
$region0: #{dg_net_forward.2}
  #allocation0 [shape = 'u32[]', space=smem, size = 0x4, offset = 0x4, fixed_abs, tag = 'smem constant byte address 0x4 - core index']
  #allocation1 [shape = 'u32[144,128]{1,0:T(1,128)}', space=vmem, size = 0x12000, scoped, tag = 'internal scratch']
  %s0 = inlined_call_operand.vmem [shape: f32[16,256], index: 0, kind: input, shape index: {}]
  %s1 = inlined_call_operand.vmem [shape: f32[256,384], index: 1, kind: input, shape index: {}]
  %s2 = inlined_call_operand.vmem [shape: f32[1,384], index: 2, kind: input, shape index: {}]
  %s3 = inlined_call_operand.vmem [shape: bf16[16,384], index: 3, kind: output, shape index: {}]
  %s4 = sld [smem:[#allocation0]]
  $region22: #{dg_net_forward.2} parent=0
    _
  %s6 = ssub.s32 1, %s4
  %s7 = scalar_select 0, %s6, %s4
  // Predicated region
  $region2: #{dg_net_forward.2} parent=0 // pred_check
    _
  $region3: #{dg_net_forward.2} parent=0 // pred_check_branch
    %9 = sbr.rel (0) target = $region5
  $region4: #{dg_net_forward.2} parent=0 // pred_region
    _
  $region5: #{dg_net_forward.2} parent=0 // pred_fallthru
    _
  // Predicated region
  $region6: #{dg_net_forward.2} parent=0 // pred_check
    _
  $region7: #{dg_net_forward.2} parent=0 // pred_check_branch
    %11 = sbr.rel (0) target = $region9
  $region8: #{dg_net_forward.2} parent=0 // pred_region
    _
  $region9: #{dg_net_forward.2} parent=0 // pred_fallthru
    _
  // Predicated region
  $region10: #{dg_net_forward.2} parent=0 // pred_check
    _
  $region11: #{dg_net_forward.2} parent=0 // pred_check_branch
    %13 = sbr.rel (0) target = $region13
  $region12: #{dg_net_forward.2} parent=0 // pred_region
    _
  $region13: #{dg_net_forward.2} parent=0 // pred_fallthru
    _
  %v15 = vld [vmem:[%s0] sm:$0xff]
  %v16 = vld [vmem:[%s0 + $0x8] sm:$0xff]
  %v17 = vld [vmem:[%s0 + $0x10] sm:$0xff]
  %v18 = vld [vmem:[%s0 + $0x18] sm:$0xff]
  %v19 = vpack.c.bf16 %v17, %v15
  %v20 = vpack.c.bf16 %v18, %v16
  %v21 = vld [vmem:[%s1] sm:$0xff]
  %v22 = vld [vmem:[%s1 + $0x8] sm:$0xff]
  %v23 = vld [vmem:[%s1 + $0x10] sm:$0xff]
  %v24 = vld [vmem:[%s1 + $0x18] sm:$0xff]
  %v25 = vld [vmem:[%s1 + $0x20] sm:$0xff]
  %v26 = vld [vmem:[%s1 + $0x28] sm:$0xff]
  %v27 = vld [vmem:[%s1 + $0x30] sm:$0xff]
  %v28 = vld [vmem:[%s1 + $0x38] sm:$0xff]
  %v29 = vld [vmem:[%s1 + $0x40] sm:$0xff]
  %v30 = vld [vmem:[%s1 + $0x48] sm:$0xff]
  %v31 = vld [vmem:[%s1 + $0x50] sm:$0xff]
  %v32 = vld [vmem:[%s1 + $0x58] sm:$0xff]
  %v33 = vld [vmem:[%s1 + $0x60] sm:$0xff]
  %v34 = vld [vmem:[%s1 + $0x68] sm:$0xff]
  %v35 = vld [vmem:[%s1 + $0x70] sm:$0xff]
  %v36 = vld [vmem:[%s1 + $0x78] sm:$0xff]
  %v37 = vld [vmem:[%s1 + $0x80] sm:$0xff]
  %v38 = vld [vmem:[%s1 + $0x88] sm:$0xff]
  %v39 = vld [vmem:[%s1 + $0x90] sm:$0xff]
  %v40 = vld [vmem:[%s1 + $0x98] sm:$0xff]
  %v41 = vld [vmem:[%s1 + $0xa0] sm:$0xff]
  %v42 = vld [vmem:[%s1 + $0xa8] sm:$0xff]
  %v43 = vld [vmem:[%s1 + $0xb0] sm:$0xff]
  %v44 = vld [vmem:[%s1 + $0xb8] sm:$0xff]
  %v45 = vld [vmem:[%s1 + $0xc0] sm:$0xff]
  %v46 = vld [vmem:[%s1 + $0xc8] sm:$0xff]
  %v47 = vld [vmem:[%s1 + $0xd0] sm:$0xff]
  %v48 = vld [vmem:[%s1 + $0xd8] sm:$0xff]
  %v49 = vld [vmem:[%s1 + $0xe0] sm:$0xff]
  %v50 = vld [vmem:[%s1 + $0xe8] sm:$0xff]
  %v51 = vld [vmem:[%s1 + $0xf0] sm:$0xff]
  %v52 = vld [vmem:[%s1 + $0xf8] sm:$0xff]
  %v53 = vld [vmem:[%s1 + $0x100] sm:$0xff]
  %v54 = vld [vmem:[%s1 + $0x108] sm:$0xff]
  %v55 = vld [vmem:[%s1 + $0x110] sm:$0xff]
  %v56 = vld [vmem:[%s1 + $0x118] sm:$0xff]
  %v57 = vld [vmem:[%s1 + $0x120] sm:$0xff]
  %v58 = vld [vmem:[%s1 + $0x128] sm:$0xff]
  %v59 = vld [vmem:[%s1 + $0x130] sm:$0xff]
  %v60 = vld [vmem:[%s1 + $0x138] sm:$0xff]
  %v61 = vld [vmem:[%s1 + $0x140] sm:$0xff]
  %v62 = vld [vmem:[%s1 + $0x148] sm:$0xff]
  %v63 = vld [vmem:[%s1 + $0x150] sm:$0xff]
  %v64 = vld [vmem:[%s1 + $0x158] sm:$0xff]
  %v65 = vld [vmem:[%s1 + $0x160] sm:$0xff]
  %v66 = vld [vmem:[%s1 + $0x168] sm:$0xff]
  %v67 = vld [vmem:[%s1 + $0x170] sm:$0xff]
  %v68 = vld [vmem:[%s1 + $0x178] sm:$0xff]
  %v69 = vld [vmem:[%s1 + $0x180] sm:$0xff]
  %v70 = vld [vmem:[%s1 + $0x188] sm:$0xff]
  %v71 = vld [vmem:[%s1 + $0x190] sm:$0xff]
  %v72 = vld [vmem:[%s1 + $0x198] sm:$0xff]
  %v73 = vld [vmem:[%s1 + $0x1a0] sm:$0xff]
  %v74 = vld [vmem:[%s1 + $0x1a8] sm:$0xff]
  %v75 = vld [vmem:[%s1 + $0x1b0] sm:$0xff]
  %v76 = vld [vmem:[%s1 + $0x1b8] sm:$0xff]
  %v77 = vld [vmem:[%s1 + $0x1c0] sm:$0xff]
  %v78 = vld [vmem:[%s1 + $0x1c8] sm:$0xff]
  %v79 = vld [vmem:[%s1 + $0x1d0] sm:$0xff]
  %v80 = vld [vmem:[%s1 + $0x1d8] sm:$0xff]
  %v81 = vld [vmem:[%s1 + $0x1e0] sm:$0xff]
  %v82 = vld [vmem:[%s1 + $0x1e8] sm:$0xff]
  %v83 = vld [vmem:[%s1 + $0x1f0] sm:$0xff]
  %v84 = vld [vmem:[%s1 + $0x1f8] sm:$0xff]
  %v85 = vld [vmem:[%s1 + $0x200] sm:$0xff]
  %v86 = vld [vmem:[%s1 + $0x208] sm:$0xff]
  %v87 = vld [vmem:[%s1 + $0x210] sm:$0xff]
  %v88 = vld [vmem:[%s1 + $0x218] sm:$0xff]
  %v89 = vld [vmem:[%s1 + $0x220] sm:$0xff]
  %v90 = vld [vmem:[%s1 + $0x228] sm:$0xff]
  %v91 = vld [vmem:[%s1 + $0x230] sm:$0xff]
  %v92 = vld [vmem:[%s1 + $0x238] sm:$0xff]
  %v93 = vld [vmem:[%s1 + $0x240] sm:$0xff]
  %v94 = vld [vmem:[%s1 + $0x248] sm:$0xff]
  %v95 = vld [vmem:[%s1 + $0x250] sm:$0xff]
  %v96 = vld [vmem:[%s1 + $0x258] sm:$0xff]
  %v97 = vld [vmem:[%s1 + $0x260] sm:$0xff]
  %v98 = vld [vmem:[%s1 + $0x268] sm:$0xff]
  %v99 = vld [vmem:[%s1 + $0x270] sm:$0xff]
  %v100 = vld [vmem:[%s1 + $0x278] sm:$0xff]
  %v101 = vld [vmem:[%s1 + $0x280] sm:$0xff]
  %v102 = vld [vmem:[%s1 + $0x288] sm:$0xff]
  %v103 = vld [vmem:[%s1 + $0x290] sm:$0xff]
  %v104 = vld [vmem:[%s1 + $0x298] sm:$0xff]
  %v105 = vld [vmem:[%s1 + $0x2a0] sm:$0xff]
  %v106 = vld [vmem:[%s1 + $0x2a8] sm:$0xff]
  %v107 = vld [vmem:[%s1 + $0x2b0] sm:$0xff]
  %v108 = vld [vmem:[%s1 + $0x2b8] sm:$0xff]
  %v109 = vld [vmem:[%s1 + $0x2c0] sm:$0xff]
  %v110 = vld [vmem:[%s1 + $0x2c8] sm:$0xff]
  %v111 = vld [vmem:[%s1 + $0x2d0] sm:$0xff]
  %v112 = vld [vmem:[%s1 + $0x2d8] sm:$0xff]
  %v113 = vld [vmem:[%s1 + $0x2e0] sm:$0xff]
  %v114 = vld [vmem:[%s1 + $0x2e8] sm:$0xff]
  %v115 = vld [vmem:[%s1 + $0x2f0] sm:$0xff]
  %v116 = vld [vmem:[%s1 + $0x2f8] sm:$0xff]
  %v117 = vpack.c.bf16 %v24, %v21
  %v118 = vpack.c.bf16 %v25, %v22
  %v119 = vpack.c.bf16 %v26, %v23
  %v120 = vpack.c.bf16 %v30, %v27
  %v121 = vpack.c.bf16 %v31, %v28
  %v122 = vpack.c.bf16 %v32, %v29
  %v123 = vpack.c.bf16 %v36, %v33
  %v124 = vpack.c.bf16 %v37, %v34
  %v125 = vpack.c.bf16 %v38, %v35
  %v126 = vpack.c.bf16 %v42, %v39
  %v127 = vpack.c.bf16 %v43, %v40
  %v128 = vpack.c.bf16 %v44, %v41
  %v129 = vpack.c.bf16 %v48, %v45
  %v130 = vpack.c.bf16 %v49, %v46
  %v131 = vpack.c.bf16 %v50, %v47
  %v132 = vpack.c.bf16 %v54, %v51
  %v133 = vpack.c.bf16 %v55, %v52
  %v134 = vpack.c.bf16 %v56, %v53
  %v135 = vpack.c.bf16 %v60, %v57
  %v136 = vpack.c.bf16 %v61, %v58
  %v137 = vpack.c.bf16 %v62, %v59
  %v138 = vpack.c.bf16 %v66, %v63
  %v139 = vpack.c.bf16 %v67, %v64
  %v140 = vpack.c.bf16 %v68, %v65
  %v141 = vpack.c.bf16 %v72, %v69
  %v142 = vpack.c.bf16 %v73, %v70
  %v143 = vpack.c.bf16 %v74, %v71
  %v144 = vpack.c.bf16 %v78, %v75
  %v145 = vpack.c.bf16 %v79, %v76
  %v146 = vpack.c.bf16 %v80, %v77
  %v147 = vpack.c.bf16 %v84, %v81
  %v148 = vpack.c.bf16 %v85, %v82
  %v149 = vpack.c.bf16 %v86, %v83
  %v150 = vpack.c.bf16 %v90, %v87
  %v151 = vpack.c.bf16 %v91, %v88
  %v152 = vpack.c.bf16 %v92, %v89
  %v153 = vpack.c.bf16 %v96, %v93
  %v154 = vpack.c.bf16 %v97, %v94
  %v155 = vpack.c.bf16 %v98, %v95
  %v156 = vpack.c.bf16 %v102, %v99
  %v157 = vpack.c.bf16 %v103, %v100
  %v158 = vpack.c.bf16 %v104, %v101
  %v159 = vpack.c.bf16 %v108, %v105
  %v160 = vpack.c.bf16 %v109, %v106
  %v161 = vpack.c.bf16 %v110, %v107
  %v162 = vpack.c.bf16 %v114, %v111
  %v163 = vpack.c.bf16 %v115, %v112
  %v164 = vpack.c.bf16 %v116, %v113
  %v165 = vld [vmem:[%s2] sm:$0x7]
  %v167 = vlaneseq
  %v168 = vshrl.u32 %v167, 7
  %v169 = vsub.s32 0, %v168
  %v170 = vrot.slane %v165, %v169
  %v171 = vlaneseq
  %v172 = vshrl.u32 %v171, 7
  %v173 = vsub.s32 1, %v172
  %v174 = vrot.slane %v165, %v173
  %v175 = vlaneseq
  %v176 = vshrl.u32 %v175, 7
  %v177 = vsub.s32 2, %v176
  %v178 = vrot.slane %v165, %v177
  %182 = vmatprep.subr.bf16.mxu0 %v118
  %183 = vmatpush1.bf16.msra.mxu0 %v117
  %184 = vmatprep.subr.bf16.mxu0 %v121
  %185 = vmatpush1.bf16.msra.mxu0 %v120
  %186 = vmatprep.subr.bf16.mxu0 %v124
  %187 = vmatpush1.bf16.msra.mxu0 %v123
  %188 = vmatprep.subr.bf16.mxu0 %v127
  %189 = vmatpush1.bf16.msra.mxu0 %v126
  %190 = vmatprep.subr.bf16.mxu0 %v130
  %191 = vmatpush1.bf16.msra.mxu0 %v129
  %192 = vmatprep.subr.bf16.mxu0 %v133
  %193 = vmatpush1.bf16.msra.mxu0 %v132
  %194 = vmatprep.subr.bf16.mxu0 %v136
  %195 = vmatpush1.bf16.msra.mxu0 %v135
  %196 = vmatprep.subr.bf16.mxu0 %v139
  %197 = vmatpush1.bf16.msra.mxu0 %v138
  %198 = vmatprep.subr.bf16.mxu0 %v142
  %199 = vmatpush1.bf16.msra.mxu0 %v141
  %200 = vmatprep.subr.bf16.mxu0 %v145
  %201 = vmatpush1.bf16.msra.mxu0 %v144
  %202 = vmatprep.subr.bf16.mxu0 %v148
  %203 = vmatpush1.bf16.msra.mxu0 %v147
  %204 = vmatprep.subr.bf16.mxu0 %v151
  %205 = vmatpush1.bf16.msra.mxu0 %v150
  %206 = vmatprep.subr.bf16.mxu0 %v154
  %207 = vmatpush1.bf16.msra.mxu0 %v153
  %208 = vmatprep.subr.bf16.mxu0 %v157
  %209 = vmatpush1.bf16.msra.mxu0 %v156
  %210 = vmatprep.subr.bf16.mxu0 %v160
  %211 = vmatpush1.bf16.msra.mxu0 %v159
  %212 = vmatprep.subr.bf16.mxu0 %v163
  %213 = vmatpush1.bf16.msra.mxu0 %v162
  %214 = vmatprep.mubr.bf16.mxu0 %v20
  %215 = vmatmul.mubr.bf16.gmra.mrb[0].mxu0 %v19
  %v216 = vpop.f32.mrb[0].mxu0
  %v217 = vadd.f32 %v170, %v216
  %v218 = vpop.f32.mrb[0].mxu0
  %v219 = vadd.f32 %v174, %v218
  %v220 = vpop.f32.mrb[0].mxu0
  %v221 = vadd.f32 %v170, %v220
  %v222 = vpop.f32.mrb[0].mxu0
  %v223 = vadd.f32 %v174, %v222
  %224 = vdwg.mxu0
  %225 = vmatprep.subr.bf16.mxu0 0
  %226 = vmatpush1.bf16.msra.mxu0 %v119
  %227 = vmatprep.subr.bf16.mxu0 0
  %228 = vmatpush1.bf16.msra.mxu0 %v122
  %229 = vmatprep.subr.bf16.mxu0 0
  %230 = vmatpush1.bf16.msra.mxu0 %v125
  %231 = vmatprep.subr.bf16.mxu0 0
  %232 = vmatpush1.bf16.msra.mxu0 %v128
  %233 = vmatprep.subr.bf16.mxu0 0
  %234 = vmatpush1.bf16.msra.mxu0 %v131
  %235 = vmatprep.subr.bf16.mxu0 0
  %236 = vmatpush1.bf16.msra.mxu0 %v134
  %237 = vmatprep.subr.bf16.mxu0 0
  %238 = vmatpush1.bf16.msra.mxu0 %v137
  %239 = vmatprep.subr.bf16.mxu0 0
  %240 = vmatpush1.bf16.msra.mxu0 %v140
  %241 = vmatprep.subr.bf16.mxu0 0
  %242 = vmatpush1.bf16.msra.mxu0 %v143
  %243 = vmatprep.subr.bf16.mxu0 0
  %244 = vmatpush1.bf16.msra.mxu0 %v146
  %245 = vmatprep.subr.bf16.mxu0 0
  %246 = vmatpush1.bf16.msra.mxu0 %v149
  %247 = vmatprep.subr.bf16.mxu0 0
  %248 = vmatpush1.bf16.msra.mxu0 %v152
  %249 = vmatprep.subr.bf16.mxu0 0
  %250 = vmatpush1.bf16.msra.mxu0 %v155
  %251 = vmatprep.subr.bf16.mxu0 0
  %252 = vmatpush1.bf16.msra.mxu0 %v158
  %253 = vmatprep.subr.bf16.mxu0 0
  %254 = vmatpush1.bf16.msra.mxu0 %v161
  %255 = vmatprep.subr.bf16.mxu0 0
  %256 = vmatpush1.bf16.msra.mxu0 %v164
  %257 = vmatprep.mubr.bf16.mxu0 %v20
  %258 = vmatmul.mubr.bf16.gmra.mrb[0].mxu0 %v19
  %v259 = vpop.f32.mrb[0].mxu0
  %v260 = vadd.f32 %v178, %v259
  %v261 = vpop.f32.mrb[0].mxu0
  %v262 = vpop.f32.mrb[0].mxu0
  %v263 = vadd.f32 %v178, %v262
  %v264 = vpop.f32.mrb[0].mxu0
  %265 = vdwg.mxu0
  %v266 = vpack.c.bf16 %v221, %v217
  %v267 = vpack.c.bf16 %v223, %v219
  %v268 = vpack.c.bf16 %v263, %v260
  %v272 = vunpack.c.l.b16 %v266
  %v273 = vunpack.c.l.b16 %v267
  %v274 = vunpack.c.l.b16 %v268
  %v275 = vunpack.c.h.b16 %v266
  %v276 = vunpack.c.h.b16 %v267
  %v277 = vunpack.c.h.b16 %v268
  %v278 = vpack.c.b16 %v273, %v272
  %v279 = vpack.c.b16 %v274, %v274
  %v280 = vpack.c.b16 %v276, %v275
  %v281 = vpack.c.b16 %v277, %v277
  %286 = vst [vmem:[%s3] sm:$0xff] %v278
  %287 = vst [vmem:[%s3 + $0x8] sm:$0xf] %v279
  %288 = vst [vmem:[%s3 + $0xc] sm:$0xff] %v280
  %289 = vst [vmem:[%s3 + $0x14] sm:$0xf] %v281
  // Predicated region
  $region14: #{dg_net_forward.2} parent=0 // pred_check
    _
  $region15: #{dg_net_forward.2} parent=0 // pred_check_branch
    %291 = sbr.rel (0) target = $region17
  $region16: #{dg_net_forward.2} parent=0 // pred_region
    _
  $region17: #{dg_net_forward.2} parent=0 // pred_fallthru
    _
  // Predicated region
  $region18: #{dg_net_forward.2} parent=0 // pred_check
    _
  $region19: #{dg_net_forward.2} parent=0 // pred_check_branch
    %293 = sbr.rel (0) target = $region21
  $region20: #{dg_net_forward.2} parent=0 // pred_region
    _
  $region21: #{dg_net_forward.2} parent=0 // pred_fallthru
    _

// kernel: dg_net_forward.3
$region0: #{dg_net_forward.3}
  #allocation0 [shape = 'u32[]', space=smem, size = 0x4, offset = 0x4, fixed_abs, tag = 'smem constant byte address 0x4 - core index']
  #allocation1 [shape = 'u32[144,128]{1,0:T(1,128)}', space=vmem, size = 0x12000, scoped, tag = 'internal scratch']
  %s0 = inlined_call_operand.hbm [shape: bf16[4,384], index: 0, kind: input, shape index: {}]
  %s1 = inlined_call_operand.hbm [shape: f32[384,384], index: 1, kind: input, shape index: {}]
  %s2 = inlined_call_operand.hbm [shape: f32[1,384], index: 2, kind: input, shape index: {}]
  %s3 = inlined_call_operand.hbm [shape: f32[1,384], index: 3, kind: input, shape index: {}]
  %s4 = inlined_call_operand.hbm [shape: f32[1,384], index: 4, kind: input, shape index: {}]
  %s5 = inlined_call_operand.hbm [shape: f32[384,128], index: 5, kind: input, shape index: {}]
  %s6 = inlined_call_operand.hbm [shape: f32[4,384], index: 6, kind: output, shape index: {0}]
  %s7 = inlined_call_operand.hbm [shape: f32[4,128], index: 7, kind: output, shape index: {1}]
  %s8 = inlined_call_operand.hbm [shape: f32[1,1], index: 8, kind: output, shape index: {2}]
  %9 = xla_tuple %s6, %s7, %s8
  %s10 = sld [smem:[#allocation0]]
  $region74: #{dg_net_forward.3} parent=0
    _
  %s12 = ssub.s32 1, %s10
  %s13 = scalar_select 0, %s12, %s10
  $region1: #{dg_net_forward.3} parent=0
    #allocation2 [shape = 'u8[3072]{0}', space=vmem, size = 0xc00, scoped, tag = 'input window, operand 0, single buffered']
    #allocation3 [shape = 's32[1]{0}', space=sflag, size = 0x4, scoped, tag = 'scoped memory for dg_net_forward.3']
    #allocation4 [shape = 's32[1]{0}', space=sflag, size = 0x4, scoped, tag = 'scoped memory for dg_net_forward.3']
    #allocation5 [shape = 's32[1]{0}', space=sflag, size = 0x4, scoped, tag = 'scoped memory for dg_net_forward.3']
    #allocation6 [shape = 'u8[589824]{0}', space=vmem, size = 0x90000, scoped, tag = 'input window, operand 1, single buffered']
    #allocation7 [shape = 's32[1]{0}', space=sflag, size = 0x4, scoped, tag = 'scoped memory for dg_net_forward.3']
    #allocation8 [shape = 'u8[1536]{0}', space=vmem, size = 0x800, scoped, tag = 'input window, operand 2, single buffered']
    #allocation9 [shape = 'u8[1536]{0}', space=vmem, size = 0x800, scoped, tag = 'input window, operand 3, single buffered']
    #allocation10 [shape = 's32[1]{0}', space=sflag, size = 0x4, scoped, tag = 'scoped memory for dg_net_forward.3']
    #allocation11 [shape = 'u8[1536]{0}', space=vmem, size = 0x800, scoped, tag = 'input window, operand 4, single buffered']
    #allocation12 [shape = 'u8[196608]{0}', space=vmem, size = 0x30000, scoped, tag = 'input window, operand 5, single buffered']
    #allocation13 [shape = 's32[1]{0}', space=sflag, size = 0x4, scoped, tag = 'scoped memory for dg_net_forward.3']
    #allocation14 [shape = 'u8[6144]{0}', space=vmem, size = 0x1800, scoped, tag = 'output window, operand 0, single buffered']
    #allocation15 [shape = 'u8[2048]{0}', space=vmem, size = 0x800, scoped, tag = 'output window, operand 1, single buffered']
    #allocation16 [shape = 's32[1]{0}', space=sflag, size = 0x4, scoped, tag = 'scoped memory for dg_net_forward.3']
    #allocation17 [shape = 'u8[512]{0}', space=smem, size = 0x200, scoped, tag = 'output window, operand 2, single buffered']
    %14 = vsyncpa [#allocation3], 0
    %15 = vsyncpa [#allocation7], 0
    %16 = vsyncpa [#allocation10], 0
    %17 = vsyncpa [#allocation13], 0
    %18 = vsyncpa [#allocation4], 0
    %19 = vsyncpa [#allocation16], 0
    %20 = vsyncpa [#allocation5], 0
    // Predicated region
    $region2: #{dg_net_forward.3} parent=1 // pred_check
      _
    $region3: #{dg_net_forward.3} parent=1 // pred_check_branch
      %22 = sbr.rel (0) target = $region5
    $region4: #{dg_net_forward.3} parent=1 // pred_region
      %s24 = ssub.s32 96, 96
      %25 = vsyncadd [#allocation3], %s24
      %s27 = sshll.u32 [#allocation2], 4
      %s28 = int_to_ptr.vmem [resolvable:$true] %s27
      %30 = dma.hbm_to_vmem [thread:$0]  %s0, 96, %s28, [#allocation3]
    $region5: #{dg_net_forward.3} parent=1 // pred_fallthru
      _
    // Predicated region
    $region6: #{dg_net_forward.3} parent=1 // pred_check
      _
    $region7: #{dg_net_forward.3} parent=1 // pred_check_branch
      %32 = sbr.rel (0) target = $region9
    $region8: #{dg_net_forward.3} parent=1 // pred_region
      %s34 = ssub.s32 18432, 18432
      %35 = vsyncadd [#allocation7], %s34
      %s36 = sshll.u32 [#allocation6], 4
      %s37 = int_to_ptr.vmem [resolvable:$true] %s36
      %42 = dma.hbm_to_vmem [thread:$0]  %s1, 18432, %s37, [#allocation7], 384, 384, 24
    $region9: #{dg_net_forward.3} parent=1 // pred_fallthru
      _
    // Predicated region
    $region10: #{dg_net_forward.3} parent=1 // pred_check
      _
    $region11: #{dg_net_forward.3} parent=1 // pred_check_branch
      %44 = sbr.rel (0) target = $region13
    $region12: #{dg_net_forward.3} parent=1 // pred_region
      %s46 = ssub.s32 48, 48
      %47 = vsyncadd [#allocation7], %s46
      %s49 = sshll.u32 [#allocation8], 4
      %s50 = int_to_ptr.vmem [resolvable:$true] %s49
      %52 = dma.hbm_to_vmem [thread:$0]  %s2, 48, %s50, [#allocation7]
    $region13: #{dg_net_forward.3} parent=1 // pred_fallthru
      _
    // Predicated region
    $region14: #{dg_net_forward.3} parent=1 // pred_check
      _
    $region15: #{dg_net_forward.3} parent=1 // pred_check_branch
      %54 = sbr.rel (0) target = $region17
    $region16: #{dg_net_forward.3} parent=1 // pred_region
      %s56 = ssub.s32 48, 48
      %57 = vsyncadd [#allocation10], %s56
      %s59 = sshll.u32 [#allocation9], 4
      %s60 = int_to_ptr.vmem [resolvable:$true] %s59
      %62 = dma.hbm_to_vmem [thread:$0]  %s3, 48, %s60, [#allocation10]
    $region17: #{dg_net_forward.3} parent=1 // pred_fallthru
      _
    // Predicated region
    $region18: #{dg_net_forward.3} parent=1 // pred_check
      _
    $region19: #{dg_net_forward.3} parent=1 // pred_check_branch
      %64 = sbr.rel (0) target = $region21
    $region20: #{dg_net_forward.3} parent=1 // pred_region
      %s66 = ssub.s32 48, 48
      %67 = vsyncadd [#allocation10], %s66
      %s69 = sshll.u32 [#allocation11], 4
      %s70 = int_to_ptr.vmem [resolvable:$true] %s69
      %72 = dma.hbm_to_vmem [thread:$0]  %s4, 48, %s70, [#allocation10]
    $region21: #{dg_net_forward.3} parent=1 // pred_fallthru
      _
    // Predicated region
    $region22: #{dg_net_forward.3} parent=1 // pred_check
      _
    $region23: #{dg_net_forward.3} parent=1 // pred_check_branch
      %74 = sbr.rel (0) target = $region25
    $region24: #{dg_net_forward.3} parent=1 // pred_region
      %s76 = ssub.s32 6144, 6144
      %77 = vsyncadd [#allocation13], %s76
      %s78 = sshll.u32 [#allocation12], 4
      %s79 = int_to_ptr.vmem [resolvable:$true] %s78
      %84 = dma.hbm_to_vmem [thread:$0]  %s5, 6144, %s79, [#allocation13], 128, 128, 8
    $region25: #{dg_net_forward.3} parent=1 // pred_fallthru
      _
    // Predicated region
    $region26: #{dg_net_forward.3} parent=1 // pred_check
      _
    $region27: #{dg_net_forward.3} parent=1 // pred_check_branch
      %86 = sbr.rel (0) target = $region29
    $region28: #{dg_net_forward.3} parent=1 // pred_region
      %87 = dma.done [#allocation3], 96
    $region29: #{dg_net_forward.3} parent=1 // pred_fallthru
      _
    // Predicated region
    $region30: #{dg_net_forward.3} parent=1 // pred_check
      _
    $region31: #{dg_net_forward.3} parent=1 // pred_check_branch
      %89 = sbr.rel (0) target = $region33
    $region32: #{dg_net_forward.3} parent=1 // pred_region
      %90 = dma.done [#allocation7], 18432
    $region33: #{dg_net_forward.3} parent=1 // pred_fallthru
      _
    // Predicated region
    $region34: #{dg_net_forward.3} parent=1 // pred_check
      _
    $region35: #{dg_net_forward.3} parent=1 // pred_check_branch
      %92 = sbr.rel (0) target = $region37
    $region36: #{dg_net_forward.3} parent=1 // pred_region
      %93 = dma.done [#allocation7], 48
    $region37: #{dg_net_forward.3} parent=1 // pred_fallthru
      _
    // Predicated region
    $region38: #{dg_net_forward.3} parent=1 // pred_check
      _
    $region39: #{dg_net_forward.3} parent=1 // pred_check_branch
      %95 = sbr.rel (0) target = $region41
    $region40: #{dg_net_forward.3} parent=1 // pred_region
      %96 = dma.done [#allocation10], 48
    $region41: #{dg_net_forward.3} parent=1 // pred_fallthru
      _
    // Predicated region
    $region42: #{dg_net_forward.3} parent=1 // pred_check
      _
    $region43: #{dg_net_forward.3} parent=1 // pred_check_branch
      %98 = sbr.rel (0) target = $region45
    $region44: #{dg_net_forward.3} parent=1 // pred_region
      %99 = dma.done [#allocation10], 48
    $region45: #{dg_net_forward.3} parent=1 // pred_fallthru
      _
    // Predicated region
    $region46: #{dg_net_forward.3} parent=1 // pred_check
      _
    $region47: #{dg_net_forward.3} parent=1 // pred_check_branch
      %101 = sbr.rel (0) target = $region49
    $region48: #{dg_net_forward.3} parent=1 // pred_region
      %102 = dma.done [#allocation13], 6144
    $region49: #{dg_net_forward.3} parent=1 // pred_fallthru
      _
    %v104 = vld [vmem:[#allocation2] sm:$0x3f]
    %v105 = vunpack.c.l.bf16 %v104
    %v106 = vunpack.c.h.bf16 %v104
    %v107 = vld [vmem:[#allocation6] sm:$0xff]
    %v108 = vld [vmem:[#allocation6 + $0x8] sm:$0xff]
    %v109 = vld [vmem:[#allocation6 + $0x10] sm:$0xff]
    %v110 = vld [vmem:[#allocation6 + $0x18] sm:$0xff]
    %v111 = vld [vmem:[#allocation6 + $0x20] sm:$0xff]
    %v112 = vld [vmem:[#allocation6 + $0x28] sm:$0xff]
    %v113 = vld [vmem:[#allocation6 + $0x30] sm:$0xff]
    %v114 = vld [vmem:[#allocation6 + $0x38] sm:$0xff]
    %v115 = vld [vmem:[#allocation6 + $0x40] sm:$0xff]
    %v116 = vld [vmem:[#allocation6 + $0x48] sm:$0xff]
    %v117 = vld [vmem:[#allocation6 + $0x50] sm:$0xff]
    %v118 = vld [vmem:[#allocation6 + $0x58] sm:$0xff]
    %v119 = vld [vmem:[#allocation6 + $0x60] sm:$0xff]
    %v120 = vld [vmem:[#allocation6 + $0x68] sm:$0xff]
    %v121 = vld [vmem:[#allocation6 + $0x70] sm:$0xff]
    %v122 = vld [vmem:[#allocation6 + $0x78] sm:$0xff]
    %v123 = vld [vmem:[#allocation6 + $0x80] sm:$0xff]
    %v124 = vld [vmem:[#allocation6 + $0x88] sm:$0xff]
    %v125 = vld [vmem:[#allocation6 + $0x90] sm:$0xff]
    %v126 = vld [vmem:[#allocation6 + $0x98] sm:$0xff]
    %v127 = vld [vmem:[#allocation6 + $0xa0] sm:$0xff]
    %v128 = vld [vmem:[#allocation6 + $0xa8] sm:$0xff]
    %v129 = vld [vmem:[#allocation6 + $0xb0] sm:$0xff]
    %v130 = vld [vmem:[#allocation6 + $0xb8] sm:$0xff]
    %v131 = vld [vmem:[#allocation6 + $0xc0] sm:$0xff]
    %v132 = vld [vmem:[#allocation6 + $0xc8] sm:$0xff]
    %v133 = vld [vmem:[#allocation6 + $0xd0] sm:$0xff]
    %v134 = vld [vmem:[#allocation6 + $0xd8] sm:$0xff]
    %v135 = vld [vmem:[#allocation6 + $0xe0] sm:$0xff]
    %v136 = vld [vmem:[#allocation6 + $0xe8] sm:$0xff]
    %v137 = vld [vmem:[#allocation6 + $0xf0] sm:$0xff]
    %v138 = vld [vmem:[#allocation6 + $0xf8] sm:$0xff]
    %v139 = vld [vmem:[#allocation6 + $0x100] sm:$0xff]
    %v140 = vld [vmem:[#allocation6 + $0x108] sm:$0xff]
    %v141 = vld [vmem:[#allocation6 + $0x110] sm:$0xff]
    %v142 = vld [vmem:[#allocation6 + $0x118] sm:$0xff]
    %v143 = vld [vmem:[#allocation6 + $0x120] sm:$0xff]
    %v144 = vld [vmem:[#allocation6 + $0x128] sm:$0xff]
    %v145 = vld [vmem:[#allocation6 + $0x130] sm:$0xff]
    %v146 = vld [vmem:[#allocation6 + $0x138] sm:$0xff]
    %v147 = vld [vmem:[#allocation6 + $0x140] sm:$0xff]
    %v148 = vld [vmem:[#allocation6 + $0x148] sm:$0xff]
    %v149 = vld [vmem:[#allocation6 + $0x150] sm:$0xff]
    %v150 = vld [vmem:[#allocation6 + $0x158] sm:$0xff]
    %v151 = vld [vmem:[#allocation6 + $0x160] sm:$0xff]
    %v152 = vld [vmem:[#allocation6 + $0x168] sm:$0xff]
    %v153 = vld [vmem:[#allocation6 + $0x170] sm:$0xff]
    %v154 = vld [vmem:[#allocation6 + $0x178] sm:$0xff]
    %v155 = vld [vmem:[#allocation6 + $0x180] sm:$0xff]
    %v156 = vld [vmem:[#allocation6 + $0x188] sm:$0xff]
    %v157 = vld [vmem:[#allocation6 + $0x190] sm:$0xff]
    %v158 = vld [vmem:[#allocation6 + $0x198] sm:$0xff]
    %v159 = vld [vmem:[#allocation6 + $0x1a0] sm:$0xff]
    %v160 = vld [vmem:[#allocation6 + $0x1a8] sm:$0xff]
    %v161 = vld [vmem:[#allocation6 + $0x1b0] sm:$0xff]
    %v162 = vld [vmem:[#allocation6 + $0x1b8] sm:$0xff]
    %v163 = vld [vmem:[#allocation6 + $0x1c0] sm:$0xff]
    %v164 = vld [vmem:[#allocation6 + $0x1c8] sm:$0xff]
    %v165 = vld [vmem:[#allocation6 + $0x1d0] sm:$0xff]
    %v166 = vld [vmem:[#allocation6 + $0x1d8] sm:$0xff]
    %v167 = vld [vmem:[#allocation6 + $0x1e0] sm:$0xff]
    %v168 = vld [vmem:[#allocation6 + $0x1e8] sm:$0xff]
    %v169 = vld [vmem:[#allocation6 + $0x1f0] sm:$0xff]
    %v170 = vld [vmem:[#allocation6 + $0x1f8] sm:$0xff]
    %v171 = vld [vmem:[#allocation6 + $0x200] sm:$0xff]
    %v172 = vld [vmem:[#allocation6 + $0x208] sm:$0xff]
    %v173 = vld [vmem:[#allocation6 + $0x210] sm:$0xff]
    %v174 = vld [vmem:[#allocation6 + $0x218] sm:$0xff]
    %v175 = vld [vmem:[#allocation6 + $0x220] sm:$0xff]
    %v176 = vld [vmem:[#allocation6 + $0x228] sm:$0xff]
    %v177 = vld [vmem:[#allocation6 + $0x230] sm:$0xff]
    %v178 = vld [vmem:[#allocation6 + $0x238] sm:$0xff]
    %v179 = vld [vmem:[#allocation6 + $0x240] sm:$0xff]
    %v180 = vld [vmem:[#allocation6 + $0x248] sm:$0xff]
    %v181 = vld [vmem:[#allocation6 + $0x250] sm:$0xff]
    %v182 = vld [vmem:[#allocation6 + $0x258] sm:$0xff]
    %v183 = vld [vmem:[#allocation6 + $0x260] sm:$0xff]
    %v184 = vld [vmem:[#allocation6 + $0x268] sm:$0xff]
    %v185 = vld [vmem:[#allocation6 + $0x270] sm:$0xff]
    %v186 = vld [vmem:[#allocation6 + $0x278] sm:$0xff]
    %v187 = vld [vmem:[#allocation6 + $0x280] sm:$0xff]
    %v188 = vld [vmem:[#allocation6 + $0x288] sm:$0xff]
    %v189 = vld [vmem:[#allocation6 + $0x290] sm:$0xff]
    %v190 = vld [vmem:[#allocation6 + $0x298] sm:$0xff]
    %v191 = vld [vmem:[#allocation6 + $0x2a0] sm:$0xff]
    %v192 = vld [vmem:[#allocation6 + $0x2a8] sm:$0xff]
    %v193 = vld [vmem:[#allocation6 + $0x2b0] sm:$0xff]
    %v194 = vld [vmem:[#allocation6 + $0x2b8] sm:$0xff]
    %v195 = vld [vmem:[#allocation6 + $0x2c0] sm:$0xff]
    %v196 = vld [vmem:[#allocation6 + $0x2c8] sm:$0xff]
    %v197 = vld [vmem:[#allocation6 + $0x2d0] sm:$0xff]
    %v198 = vld [vmem:[#allocation6 + $0x2d8] sm:$0xff]
    %v199 = vld [vmem:[#allocation6 + $0x2e0] sm:$0xff]
    %v200 = vld [vmem:[#allocation6 + $0x2e8] sm:$0xff]
    %v201 = vld [vmem:[#allocation6 + $0x2f0] sm:$0xff]
    %v202 = vld [vmem:[#allocation6 + $0x2f8] sm:$0xff]
    %v203 = vld [vmem:[#allocation6 + $0x300] sm:$0xff]
    %v204 = vld [vmem:[#allocation6 + $0x308] sm:$0xff]
    %v205 = vld [vmem:[#allocation6 + $0x310] sm:$0xff]
    %v206 = vld [vmem:[#allocation6 + $0x318] sm:$0xff]
    %v207 = vld [vmem:[#allocation6 + $0x320] sm:$0xff]
    %v208 = vld [vmem:[#allocation6 + $0x328] sm:$0xff]
    %v209 = vld [vmem:[#allocation6 + $0x330] sm:$0xff]
    %v210 = vld [vmem:[#allocation6 + $0x338] sm:$0xff]
    %v211 = vld [vmem:[#allocation6 + $0x340] sm:$0xff]
    %v212 = vld [vmem:[#allocation6 + $0x348] sm:$0xff]
    %v213 = vld [vmem:[#allocation6 + $0x350] sm:$0xff]
    %v214 = vld [vmem:[#allocation6 + $0x358] sm:$0xff]
    %v215 = vld [vmem:[#allocation6 + $0x360] sm:$0xff]
    %v216 = vld [vmem:[#allocation6 + $0x368] sm:$0xff]
    %v217 = vld [vmem:[#allocation6 + $0x370] sm:$0xff]
    %v218 = vld [vmem:[#allocation6 + $0x378] sm:$0xff]
    %v219 = vld [vmem:[#allocation6 + $0x380] sm:$0xff]
    %v220 = vld [vmem:[#allocation6 + $0x388] sm:$0xff]
    %v221 = vld [vmem:[#allocation6 + $0x390] sm:$0xff]
    %v222 = vld [vmem:[#allocation6 + $0x398] sm:$0xff]
    %v223 = vld [vmem:[#allocation6 + $0x3a0] sm:$0xff]
    %v224 = vld [vmem:[#allocation6 + $0x3a8] sm:$0xff]
    %v225 = vld [vmem:[#allocation6 + $0x3b0] sm:$0xff]
    %v226 = vld [vmem:[#allocation6 + $0x3b8] sm:$0xff]
    %v227 = vld [vmem:[#allocation6 + $0x3c0] sm:$0xff]
    %v228 = vld [vmem:[#allocation6 + $0x3c8] sm:$0xff]
    %v229 = vld [vmem:[#allocation6 + $0x3d0] sm:$0xff]
    %v230 = vld [vmem:[#allocation6 + $0x3d8] sm:$0xff]
    %v231 = vld [vmem:[#allocation6 + $0x3e0] sm:$0xff]
    %v232 = vld [vmem:[#allocation6 + $0x3e8] sm:$0xff]
    %v233 = vld [vmem:[#allocation6 + $0x3f0] sm:$0xff]
    %v234 = vld [vmem:[#allocation6 + $0x3f8] sm:$0xff]
    %v235 = vld [vmem:[#allocation6 + $0x400] sm:$0xff]
    %v236 = vld [vmem:[#allocation6 + $0x408] sm:$0xff]
    %v237 = vld [vmem:[#allocation6 + $0x410] sm:$0xff]
    %v238 = vld [vmem:[#allocation6 + $0x418] sm:$0xff]
    %v239 = vld [vmem:[#allocation6 + $0x420] sm:$0xff]
    %v240 = vld [vmem:[#allocation6 + $0x428] sm:$0xff]
    %v241 = vld [vmem:[#allocation6 + $0x430] sm:$0xff]
    %v242 = vld [vmem:[#allocation6 + $0x438] sm:$0xff]
    %v243 = vld [vmem:[#allocation6 + $0x440] sm:$0xff]
    %v244 = vld [vmem:[#allocation6 + $0x448] sm:$0xff]
    %v245 = vld [vmem:[#allocation6 + $0x450] sm:$0xff]
    %v246 = vld [vmem:[#allocation6 + $0x458] sm:$0xff]
    %v247 = vld [vmem:[#allocation6 + $0x460] sm:$0xff]
    %v248 = vld [vmem:[#allocation6 + $0x468] sm:$0xff]
    %v249 = vld [vmem:[#allocation6 + $0x470] sm:$0xff]
    %v250 = vld [vmem:[#allocation6 + $0x478] sm:$0xff]
    %v251 = vpack.c.bf16 %v110, %v107
    %v252 = vpack.c.bf16 %v111, %v108
    %v253 = vpack.c.bf16 %v112, %v109
    %v254 = vpack.c.bf16 %v116, %v113
    %v255 = vpack.c.bf16 %v117, %v114
    %v256 = vpack.c.bf16 %v118, %v115
    %v257 = vpack.c.bf16 %v122, %v119
    %v258 = vpack.c.bf16 %v123, %v120
    %v259 = vpack.c.bf16 %v124, %v121
    %v260 = vpack.c.bf16 %v128, %v125
    %v261 = vpack.c.bf16 %v129, %v126
    %v262 = vpack.c.bf16 %v130, %v127
    %v263 = vpack.c.bf16 %v134, %v131
    %v264 = vpack.c.bf16 %v135, %v132
    %v265 = vpack.c.bf16 %v136, %v133
    %v266 = vpack.c.bf16 %v140, %v137
    %v267 = vpack.c.bf16 %v141, %v138
    %v268 = vpack.c.bf16 %v142, %v139
    %v269 = vpack.c.bf16 %v146, %v143
    %v270 = vpack.c.bf16 %v147, %v144
    %v271 = vpack.c.bf16 %v148, %v145
    %v272 = vpack.c.bf16 %v152, %v149
    %v273 = vpack.c.bf16 %v153, %v150
    %v274 = vpack.c.bf16 %v154, %v151
    %v275 = vpack.c.bf16 %v158, %v155
    %v276 = vpack.c.bf16 %v159, %v156
    %v277 = vpack.c.bf16 %v160, %v157
    %v278 = vpack.c.bf16 %v164, %v161
    %v279 = vpack.c.bf16 %v165, %v162
    %v280 = vpack.c.bf16 %v166, %v163
    %v281 = vpack.c.bf16 %v170, %v167
    %v282 = vpack.c.bf16 %v171, %v168
    %v283 = vpack.c.bf16 %v172, %v169
    %v284 = vpack.c.bf16 %v176, %v173
    %v285 = vpack.c.bf16 %v177, %v174
    %v286 = vpack.c.bf16 %v178, %v175
    %v287 = vpack.c.bf16 %v182, %v179
    %v288 = vpack.c.bf16 %v183, %v180
    %v289 = vpack.c.bf16 %v184, %v181
    %v290 = vpack.c.bf16 %v188, %v185
    %v291 = vpack.c.bf16 %v189, %v186
    %v292 = vpack.c.bf16 %v190, %v187
    %v293 = vpack.c.bf16 %v194, %v191
    %v294 = vpack.c.bf16 %v195, %v192
    %v295 = vpack.c.bf16 %v196, %v193
    %v296 = vpack.c.bf16 %v200, %v197
    %v297 = vpack.c.bf16 %v201, %v198
    %v298 = vpack.c.bf16 %v202, %v199
    %v299 = vpack.c.bf16 %v206, %v203
    %v300 = vpack.c.bf16 %v207, %v204
    %v301 = vpack.c.bf16 %v208, %v205
    %v302 = vpack.c.bf16 %v212, %v209
    %v303 = vpack.c.bf16 %v213, %v210
    %v304 = vpack.c.bf16 %v214, %v211
    %v305 = vpack.c.bf16 %v218, %v215
    %v306 = vpack.c.bf16 %v219, %v216
    %v307 = vpack.c.bf16 %v220, %v217
    %v308 = vpack.c.bf16 %v224, %v221
    %v309 = vpack.c.bf16 %v225, %v222
    %v310 = vpack.c.bf16 %v226, %v223
    %v311 = vpack.c.bf16 %v230, %v227
    %v312 = vpack.c.bf16 %v231, %v228
    %v313 = vpack.c.bf16 %v232, %v229
    %v314 = vpack.c.bf16 %v236, %v233
    %v315 = vpack.c.bf16 %v237, %v234
    %v316 = vpack.c.bf16 %v238, %v235
    %v317 = vpack.c.bf16 %v242, %v239
    %v318 = vpack.c.bf16 %v243, %v240
    %v319 = vpack.c.bf16 %v244, %v241
    %v320 = vpack.c.bf16 %v248, %v245
    %v321 = vpack.c.bf16 %v249, %v246
    %v322 = vpack.c.bf16 %v250, %v247
    %v323 = vld [vmem:[#allocation8] sm:$0x7]
    %v325 = vlaneseq
    %v326 = vshrl.u32 %v325, 7
    %v327 = vsub.s32 0, %v326
    %v328 = vrot.slane %v323, %v327
    %v329 = vlaneseq
    %v330 = vshrl.u32 %v329, 7
    %v331 = vsub.s32 1, %v330
    %v332 = vrot.slane %v323, %v331
    %v333 = vlaneseq
    %v334 = vshrl.u32 %v333, 7
    %v335 = vsub.s32 2, %v334
    %v336 = vrot.slane %v323, %v335
    %v341 = vcombine.high %v104, %v104
    %v343 = vunpack.c.l.s4 1983009808
    %v344 = vunpack.c.0.s8 %v343
    %v345 = vlaneseq
    %v346 = vshrl.u32 %v345, 7
    %v347 = vsub.s32 %v344, %v346
    %v348 = vrot.slane %v104, %v347
    %v350 = vunpack.c.l.s4 1983009808
    %v351 = vunpack.c.0.s8 %v350
    %v352 = vlaneseq
    %v353 = vshrl.u32 %v352, 7
    %v354 = vsub.s32 %v351, %v353
    %v355 = vrot.slane %v341, %v354
    %v356 = vcombine.high %v348, %v348
    %360 = vmatprep.subr.bf16.mxu0 %v252
    %361 = vmatpush1.bf16.msra.mxu0 %v251
    %362 = vmatprep.subr.bf16.mxu0 %v255
    %363 = vmatpush1.bf16.msra.mxu0 %v254
    %364 = vmatprep.subr.bf16.mxu0 %v258
    %365 = vmatpush1.bf16.msra.mxu0 %v257
    %366 = vmatprep.subr.bf16.mxu0 %v261
    %367 = vmatpush1.bf16.msra.mxu0 %v260
    %368 = vmatprep.subr.bf16.mxu0 %v264
    %369 = vmatpush1.bf16.msra.mxu0 %v263
    %370 = vmatprep.subr.bf16.mxu0 %v267
    %371 = vmatpush1.bf16.msra.mxu0 %v266
    %372 = vmatprep.subr.bf16.mxu0 %v270
    %373 = vmatpush1.bf16.msra.mxu0 %v269
    %374 = vmatprep.subr.bf16.mxu0 %v273
    %375 = vmatpush1.bf16.msra.mxu0 %v272
    %376 = vmatprep.subr.bf16.mxu0 %v276
    %377 = vmatpush1.bf16.msra.mxu0 %v275
    %378 = vmatprep.subr.bf16.mxu0 %v279
    %379 = vmatpush1.bf16.msra.mxu0 %v278
    %380 = vmatprep.subr.bf16.mxu0 %v282
    %381 = vmatpush1.bf16.msra.mxu0 %v281
    %382 = vmatprep.subr.bf16.mxu0 %v285
    %383 = vmatpush1.bf16.msra.mxu0 %v284
    %384 = vmatprep.subr.bf16.mxu0 %v288
    %385 = vmatpush1.bf16.msra.mxu0 %v287
    %386 = vmatprep.subr.bf16.mxu0 %v291
    %387 = vmatpush1.bf16.msra.mxu0 %v290
    %388 = vmatprep.subr.bf16.mxu0 %v294
    %389 = vmatpush1.bf16.msra.mxu0 %v293
    %390 = vmatprep.subr.bf16.mxu0 %v297
    %391 = vmatpush1.bf16.msra.mxu0 %v296
    %392 = vmatprep.mubr.bf16.mxu0 %v356
    %393 = vmatmul.mubr.bf16.gmra.mrb[0].mxu0 %v348
    %v394 = vpop.f32.mrb[0].mxu0
    %v395 = vadd.f32 %v328, %v394
    %v396 = vpop.f32.mrb[0].mxu0
    %v397 = vadd.f32 %v332, %v396
    %v398 = vpop.f32.mrb[0].mxu0
    %v399 = vpop.f32.mrb[0].mxu0
    %400 = vdwg.mxu0
    %401 = vmatprep.subr.bf16.mxu0 %v300
    %402 = vmatpush1.bf16.msra.mxu0 %v299
    %403 = vmatprep.subr.bf16.mxu0 %v303
    %404 = vmatpush1.bf16.msra.mxu0 %v302
    %405 = vmatprep.subr.bf16.mxu0 %v306
    %406 = vmatpush1.bf16.msra.mxu0 %v305
    %407 = vmatprep.subr.bf16.mxu0 %v309
    %408 = vmatpush1.bf16.msra.mxu0 %v308
    %409 = vmatprep.subr.bf16.mxu0 %v312
    %410 = vmatpush1.bf16.msra.mxu0 %v311
    %411 = vmatprep.subr.bf16.mxu0 %v315
    %412 = vmatpush1.bf16.msra.mxu0 %v314
    %413 = vmatprep.subr.bf16.mxu0 %v318
    %414 = vmatpush1.bf16.msra.mxu0 %v317
    %415 = vmatprep.subr.bf16.mxu0 %v321
    %416 = vmatpush1.bf16.msra.mxu0 %v320
    %417 = vmatprep.subr.bf16.mxu0 0
    %418 = vmatpush1.bf16.msra.mxu0 0
    %419 = vmatprep.subr.bf16.mxu0 0
    %420 = vmatpush1.bf16.msra.mxu0 0
    %421 = vmatprep.subr.bf16.mxu0 0
    %422 = vmatpush1.bf16.msra.mxu0 0
    %423 = vmatprep.subr.bf16.mxu0 0
    %424 = vmatpush1.bf16.msra.mxu0 0
    %425 = vmatprep.subr.bf16.mxu0 0
    %426 = vmatpush1.bf16.msra.mxu0 0
    %427 = vmatprep.subr.bf16.mxu0 0
    %428 = vmatpush1.bf16.msra.mxu0 0
    %429 = vmatprep.subr.bf16.mxu0 0
    %430 = vmatpush1.bf16.msra.mxu0 0
    %431 = vmatprep.subr.bf16.mxu0 0
    %432 = vmatpush1.bf16.msra.mxu0 0
    %433 = vmatprep.mubr.bf16.mxu0 0
    %434 = vmatmul.mubr.bf16.gmra.mrb[0].mxu0 %v355
    %v435 = vpop.f32.mrb[0].mxu0
    %v436 = vadd.f32 %v395, %v435
    %v437 = vpop.f32.mrb[0].mxu0
    %v438 = vadd.f32 %v397, %v437
    %v439 = vpop.f32.mrb[0].mxu0
    %v440 = vpop.f32.mrb[0].mxu0
    %441 = vdwg.mxu0
    %442 = vmatprep.subr.bf16.mxu0 0
    %443 = vmatpush1.bf16.msra.mxu0 %v253
    %444 = vmatprep.subr.bf16.mxu0 0
    %445 = vmatpush1.bf16.msra.mxu0 %v256
    %446 = vmatprep.subr.bf16.mxu0 0
    %447 = vmatpush1.bf16.msra.mxu0 %v259
    %448 = vmatprep.subr.bf16.mxu0 0
    %449 = vmatpush1.bf16.msra.mxu0 %v262
    %450 = vmatprep.subr.bf16.mxu0 0
    %451 = vmatpush1.bf16.msra.mxu0 %v265
    %452 = vmatprep.subr.bf16.mxu0 0
    %453 = vmatpush1.bf16.msra.mxu0 %v268
    %454 = vmatprep.subr.bf16.mxu0 0
    %455 = vmatpush1.bf16.msra.mxu0 %v271
    %456 = vmatprep.subr.bf16.mxu0 0
    %457 = vmatpush1.bf16.msra.mxu0 %v274
    %458 = vmatprep.subr.bf16.mxu0 0
    %459 = vmatpush1.bf16.msra.mxu0 %v277
    %460 = vmatprep.subr.bf16.mxu0 0
    %461 = vmatpush1.bf16.msra.mxu0 %v280
    %462 = vmatprep.subr.bf16.mxu0 0
    %463 = vmatpush1.bf16.msra.mxu0 %v283
    %464 = vmatprep.subr.bf16.mxu0 0
    %465 = vmatpush1.bf16.msra.mxu0 %v286
    %466 = vmatprep.subr.bf16.mxu0 0
    %467 = vmatpush1.bf16.msra.mxu0 %v289
    %468 = vmatprep.subr.bf16.mxu0 0
    %469 = vmatpush1.bf16.msra.mxu0 %v292
    %470 = vmatprep.subr.bf16.mxu0 0
    %471 = vmatpush1.bf16.msra.mxu0 %v295
    %472 = vmatprep.subr.bf16.mxu0 0
    %473 = vmatpush1.bf16.msra.mxu0 %v298
    %474 = vmatprep.mubr.bf16.mxu0 %v356
    %475 = vmatmul.mubr.bf16.gmra.mrb[0].mxu0 %v348
    %v476 = vpop.f32.mrb[0].mxu0
    %v477 = vadd.f32 %v336, %v476
    %v478 = vpop.f32.mrb[0].mxu0
    %v479 = vpop.f32.mrb[0].mxu0
    %v480 = vpop.f32.mrb[0].mxu0
    %481 = vdwg.mxu0
    %482 = vmatprep.subr.bf16.mxu0 0
    %483 = vmatpush1.bf16.msra.mxu0 %v301
    %484 = vmatprep.subr.bf16.mxu0 0
    %485 = vmatpush1.bf16.msra.mxu0 %v304
    %486 = vmatprep.subr.bf16.mxu0 0
    %487 = vmatpush1.bf16.msra.mxu0 %v307
    %488 = vmatprep.subr.bf16.mxu0 0
    %489 = vmatpush1.bf16.msra.mxu0 %v310
    %490 = vmatprep.subr.bf16.mxu0 0
    %491 = vmatpush1.bf16.msra.mxu0 %v313
    %492 = vmatprep.subr.bf16.mxu0 0
    %493 = vmatpush1.bf16.msra.mxu0 %v316
    %494 = vmatprep.subr.bf16.mxu0 0
    %495 = vmatpush1.bf16.msra.mxu0 %v319
    %496 = vmatprep.subr.bf16.mxu0 0
    %497 = vmatpush1.bf16.msra.mxu0 %v322
    %498 = vmatprep.subr.bf16.mxu0 0
    %499 = vmatpush1.bf16.msra.mxu0 0
    %500 = vmatprep.subr.bf16.mxu0 0
    %501 = vmatpush1.bf16.msra.mxu0 0
    %502 = vmatprep.subr.bf16.mxu0 0
    %503 = vmatpush1.bf16.msra.mxu0 0
    %504 = vmatprep.subr.bf16.mxu0 0
    %505 = vmatpush1.bf16.msra.mxu0 0
    %506 = vmatprep.subr.bf16.mxu0 0
    %507 = vmatpush1.bf16.msra.mxu0 0
    %508 = vmatprep.subr.bf16.mxu0 0
    %509 = vmatpush1.bf16.msra.mxu0 0
    %510 = vmatprep.subr.bf16.mxu0 0
    %511 = vmatpush1.bf16.msra.mxu0 0
    %512 = vmatprep.subr.bf16.mxu0 0
    %513 = vmatpush1.bf16.msra.mxu0 0
    %514 = vmatprep.mubr.bf16.mxu0 0
    %515 = vmatmul.mubr.bf16.gmra.mrb[0].mxu0 %v355
    %v516 = vpop.f32.mrb[0].mxu0
    %v517 = vadd.f32 %v477, %v516
    %v518 = vpop.f32.mrb[0].mxu0
    %v519 = vpop.f32.mrb[0].mxu0
    %v520 = vpop.f32.mrb[0].mxu0
    %521 = vdwg.mxu0
    %v524 = vcombine.low %v436, %v438
    %526 = vst [vmem:[#allocation14] sm:$0xff] %v524
    %527 = vst [vmem:[#allocation14 + $0x8] sm:$0xf] %v517
    %vm528 = vcmask 1043456
    %v529 = vsel %vm528, %v436, -inf
    %v530 = vsel %vm528, %v438, -inf
    %v531 = vsel %vm528, %v517, -inf
    %v532 = vmax.f32 %v529, %v530
    %v533 = vmax.f32 %v532, %v531
    %534 = vmax.xlane.f32.xlu0 %v533
    %v535 = vpop.xlane.xlu0 %534
    %v536 = vsub.f32 %v436, %v535
    %v537 = vsub.f32 %v438, %v535
    %v538 = vsub.f32 %v517, %v535
    %v539 = vmul.f32 %v536, 1.442695
    %v540 = vpow.pop %v539
    %v541 = vmul.f32 %v537, 1.442695
    %v542 = vpow.pop %v541
    %v543 = vmul.f32 %v538, 1.442695
    %v544 = vpow.pop %v543
    %v545 = vsel %vm528, %v540, 0.0
    %v546 = vsel %vm528, %v542, 0.0
    %v547 = vadd.f32 %v545, %v546
    %v548 = vsel %vm528, %v544, 0.0
    %v549 = vadd.f32 %v547, %v548
    %550 = vadd.xlane.f32.xlu0 %v549
    %v551 = vpop.xlane.xlu0 %550
    %v552 = vlog2.pop %v551
    %v553 = vmul.f32 %v552, 0.6931472
    %v554 = vsub.f32 %v536, %v553
    %v555 = vsub.f32 %v537, %v553
    %v556 = vsub.f32 %v538, %v553
    %v558 = vcombine.high %v105, %v105
    %v560 = vsel %vm528, %v105, -inf
    %v561 = vsel %vm528, %v558, -inf
    %v562 = vsel %vm528, %v106, -inf
    %v563 = vmax.f32 %v560, %v561
    %v564 = vmax.f32 %v563, %v562
    %565 = vmax.xlane.f32.xlu0 %v564
    %v566 = vpop.xlane.xlu0 %565
    %v569 = vunpack.c.l.s4 839922192
    %v570 = vunpack.c.0.s8 %v569
    %v571 = vlaneseq
    %v572 = vshrl.u32 %v571, 7
    %v573 = vsub.s32 %v570, %v572
    %v574 = vrot.slane %v566, %v573
    %v576 = vsub.f32 %v105, %v574
    %v577 = vsub.f32 %v106, %v574
    %v578 = vmul.f32 %v576, 1.442695
    %v579 = vpow.pop %v578
    %v580 = vmul.f32 %v577, 1.442695
    %v581 = vpow.pop %v580
    %v583 = vcombine.high %v579, %v579
    %v585 = vsel %vm528, %v579, 0.0
    %v586 = vsel %vm528, %v583, 0.0
    %v587 = vadd.f32 %v585, %v586
    %v588 = vsel %vm528, %v581, 0.0
    %v589 = vadd.f32 %v587, %v588
    %590 = vadd.xlane.f32.xlu0 %v589
    %v591 = vpop.xlane.xlu0 %590
    %v594 = vunpack.c.l.s4 839922192
    %v595 = vunpack.c.0.s8 %v594
    %v596 = vlaneseq
    %v597 = vshrl.u32 %v596, 7
    %v598 = vsub.s32 %v595, %v597
    %v599 = vrot.slane %v591, %v598
    %v601 = vrcp.pop %v599
    %v602 = vmul.f32 %v579, %v601
    %v603 = vmul.f32 %v581, %v601
    %v604 = vlog2.pop %v591
    %v605 = vmul.f32 %v604, 0.6931472
    %v608 = vunpack.c.l.s4 839922192
    %v609 = vunpack.c.0.s8 %v608
    %v610 = vlaneseq
    %v611 = vshrl.u32 %v610, 7
    %v612 = vsub.s32 %v609, %v611
    %v613 = vrot.slane %v605, %v612
    %v615 = vsub.f32 %v576, %v613
    %v616 = vsub.f32 %v577, %v613
    %v619 = vcombine.low %v554, %v555
    %v621 = vsub.f32 %v615, %v619
    %v622 = vsub.f32 %v616, %v556
    %v623 = vmul.f32 %v602, %v621
    %v624 = vmul.f32 %v603, %v622
    %v626 = vcombine.high %v623, %v623
    %v628 = vsel %vm528, %v623, 0.0
    %v629 = vsel %vm528, %v626, 0.0
    %v630 = vadd.f32 %v628, %v629
    %v631 = vsel %vm528, %v624, 0.0
    %v632 = vadd.f32 %v630, %v631
    %633 = vadd.xlane.f32.xlu0 %v632
    %v634 = vpop.xlane.xlu0 %633
    %v635 = vrot.slane %v634, 4
    %v636 = vadd.f32 %v634, %v635
    %v637 = vrot.slane %v636, 2
    %v638 = vadd.f32 %v636, %v637
    %v639 = vrot.slane %v638, 1
    %v640 = vadd.f32 %v638, %v639
    %s641 = vtos %v640
    %s642 = smul.f32 %s641, 0.25
    %s643 = scalar_lea.smem [#allocation17], 0
    %644 = sst [smem:[%s643]] %s642
    %v645 = vlaneseq
    %v646 = vshrl.u32 %v645, 7
    %vm647 = vcmp.lt.s32.totalorder %v646, 2
    %v648 = vsel %vm647, %v105, 0.0
    %v649 = vsel %vm647, %v558, 0.0
    %v650 = vsel %vm647, %v106, 0.0
    %v651 = vsel %vm528, %v648, 0.0
    %v652 = vrot.slane %v651, 4
    %v653 = vadd.f32 %v651, %v652
    %v654 = vrot.slane %v653, 2
    %v655 = vadd.f32 %v653, %v654
    %v656 = vrot.slane %v655, 1
    %v657 = vadd.f32 %v655, %v656
    %v658 = vsel %vm528, %v649, 0.0
    %v659 = vrot.slane %v658, 4
    %v660 = vadd.f32 %v658, %v659
    %v661 = vrot.slane %v660, 2
    %v662 = vadd.f32 %v660, %v661
    %v663 = vrot.slane %v662, 1
    %v664 = vadd.f32 %v662, %v663
    %v665 = vsel %vm528, %v650, 0.0
    %v666 = vrot.slane %v665, 4
    %v667 = vadd.f32 %v665, %v666
    %v668 = vrot.slane %v667, 2
    %v669 = vadd.f32 %v667, %v668
    %v670 = vrot.slane %v669, 1
    %v671 = vadd.f32 %v669, %v670
    %v672 = vsel %vm647, 0.0, %v105
    %v673 = vsel %vm647, 0.0, %v558
    %v674 = vsel %vm647, 0.0, %v106
    %v675 = vsel %vm528, %v672, 0.0
    %v676 = vrot.slane %v675, 4
    %v677 = vadd.f32 %v675, %v676
    %v678 = vrot.slane %v677, 2
    %v679 = vadd.f32 %v677, %v678
    %v680 = vrot.slane %v679, 1
    %v681 = vadd.f32 %v679, %v680
    %v682 = vsel %vm528, %v673, 0.0
    %v683 = vrot.slane %v682, 4
    %v684 = vadd.f32 %v682, %v683
    %v685 = vrot.slane %v684, 2
    %v686 = vadd.f32 %v684, %v685
    %v687 = vrot.slane %v686, 1
    %v688 = vadd.f32 %v686, %v687
    %v689 = vsel %vm528, %v674, 0.0
    %v690 = vrot.slane %v689, 4
    %v691 = vadd.f32 %v689, %v690
    %v692 = vrot.slane %v691, 2
    %v693 = vadd.f32 %v691, %v692
    %v694 = vrot.slane %v693, 1
    %v695 = vadd.f32 %v693, %v694
    %v696 = vmul.f32 %v657, 0.5
    %v697 = vmul.f32 %v664, 0.5
    %v698 = vmul.f32 %v671, 0.5
    %v699 = vmul.f32 %v681, 0.5
    %v700 = vmul.f32 %v688, 0.5
    %v701 = vmul.f32 %v695, 0.5
    %v702 = vsel %vm647, %v696, %v699
    %v703 = vsel %vm647, %v697, %v700
    %v704 = vsel %vm647, %v698, %v701
    %v707 = vcombine.low %v702, %v703
    %v709 = vsub.f32 %v105, %v707
    %v710 = vsub.f32 %v106, %v704
    %v711 = vmul.f32 %v709, %v709
    %v712 = vmul.f32 %v710, %v710
    %v714 = vcombine.high %v711, %v711
    %v716 = vsel %vm647, %v711, 0.0
    %v717 = vsel %vm647, %v714, 0.0
    %v718 = vsel %vm647, %v712, 0.0
    %v719 = vsel %vm528, %v716, 0.0
    %v720 = vrot.slane %v719, 4
    %v721 = vadd.f32 %v719, %v720
    %v722 = vrot.slane %v721, 2
    %v723 = vadd.f32 %v721, %v722
    %v724 = vrot.slane %v723, 1
    %v725 = vadd.f32 %v723, %v724
    %v726 = vsel %vm528, %v717, 0.0
    %v727 = vrot.slane %v726, 4
    %v728 = vadd.f32 %v726, %v727
    %v729 = vrot.slane %v728, 2
    %v730 = vadd.f32 %v728, %v729
    %v731 = vrot.slane %v730, 1
    %v732 = vadd.f32 %v730, %v731
    %v733 = vsel %vm528, %v718, 0.0
    %v734 = vrot.slane %v733, 4
    %v735 = vadd.f32 %v733, %v734
    %v736 = vrot.slane %v735, 2
    %v737 = vadd.f32 %v735, %v736
    %v738 = vrot.slane %v737, 1
    %v739 = vadd.f32 %v737, %v738
    %v740 = vmul.f32 %v725, 0.5
    %v741 = vmul.f32 %v732, 0.5
    %v742 = vmul.f32 %v739, 0.5
    %v743 = vsel %vm647, 0.0, %v711
    %v744 = vsel %vm647, 0.0, %v714
    %v745 = vsel %vm647, 0.0, %v712
    %v746 = vsel %vm528, %v743, 0.0
    %v747 = vrot.slane %v746, 4
    %v748 = vadd.f32 %v746, %v747
    %v749 = vrot.slane %v748, 2
    %v750 = vadd.f32 %v748, %v749
    %v751 = vrot.slane %v750, 1
    %v752 = vadd.f32 %v750, %v751
    %v753 = vsel %vm528, %v744, 0.0
    %v754 = vrot.slane %v753, 4
    %v755 = vadd.f32 %v753, %v754
    %v756 = vrot.slane %v755, 2
    %v757 = vadd.f32 %v755, %v756
    %v758 = vrot.slane %v757, 1
    %v759 = vadd.f32 %v757, %v758
    %v760 = vsel %vm528, %v745, 0.0
    %v761 = vrot.slane %v760, 4
    %v762 = vadd.f32 %v760, %v761
    %v763 = vrot.slane %v762, 2
    %v764 = vadd.f32 %v762, %v763
    %v765 = vrot.slane %v764, 1
    %v766 = vadd.f32 %v764, %v765
    %v767 = vmul.f32 %v752, 0.5
    %v768 = vmul.f32 %v759, 0.5
    %v769 = vmul.f32 %v766, 0.5
    %v770 = vsel %vm647, %v740, %v767
    %v771 = vsel %vm647, %v741, %v768
    %v772 = vsel %vm647, %v742, %v769
    %v773 = vadd.f32 %v770, 1e-05
    %v774 = vadd.f32 %v771, 1e-05
    %v775 = vadd.f32 %v772, 1e-05
    %v776 = vrsqrt.pop %v773
    %v777 = vrsqrt.pop %v774
    %v778 = vrsqrt.pop %v775
    %v781 = vcombine.low %v776, %v777
    %v783 = vmul.f32 %v709, %v781
    %v784 = vmul.f32 %v710, %v778
    %v785 = vld [vmem:[#allocation9] sm:$0x7]
    %v787 = vlaneseq
    %v788 = vshrl.u32 %v787, 7
    %v789 = vsub.s32 0, %v788
    %v790 = vrot.slane %v785, %v789
    %v791 = vlaneseq
    %v792 = vshrl.u32 %v791, 7
    %v793 = vsub.s32 1, %v792
    %v794 = vrot.slane %v785, %v793
    %v795 = vlaneseq
    %v796 = vshrl.u32 %v795, 7
    %v797 = vsub.s32 2, %v796
    %v798 = vrot.slane %v785, %v797
    %v800 = vcombine.low %v790, %v794
    %v802 = vmul.f32 %v783, %v800
    %v803 = vmul.f32 %v784, %v798
    %v804 = vld [vmem:[#allocation11] sm:$0x7]
    %v806 = vlaneseq
    %v807 = vshrl.u32 %v806, 7
    %v808 = vsub.s32 0, %v807
    %v809 = vrot.slane %v804, %v808
    %v810 = vlaneseq
    %v811 = vshrl.u32 %v810, 7
    %v812 = vsub.s32 1, %v811
    %v813 = vrot.slane %v804, %v812
    %v814 = vlaneseq
    %v815 = vshrl.u32 %v814, 7
    %v816 = vsub.s32 2, %v815
    %v817 = vrot.slane %v804, %v816
    %v819 = vcombine.low %v809, %v813
    %v821 = vadd.f32 %v802, %v819
    %v822 = vadd.f32 %v803, %v817
    %v824 = vcombine.high %v821, %v821
    %v826 = vpack.c.bf16 %v821, %v821
    %v827 = vpack.c.bf16 %v824, %v824
    %v828 = vpack.c.bf16 %v822, %v822
    %v829 = vld [vmem:[#allocation12] sm:$0xff]
    %v830 = vld [vmem:[#allocation12 + $0x8] sm:$0xff]
    %v831 = vld [vmem:[#allocation12 + $0x10] sm:$0xff]
    %v832 = vld [vmem:[#allocation12 + $0x18] sm:$0xff]
    %v833 = vld [vmem:[#allocation12 + $0x20] sm:$0xff]
    %v834 = vld [vmem:[#allocation12 + $0x28] sm:$0xff]
    %v835 = vld [vmem:[#allocation12 + $0x30] sm:$0xff]
    %v836 = vld [vmem:[#allocation12 + $0x38] sm:$0xff]
    %v837 = vld [vmem:[#allocation12 + $0x40] sm:$0xff]
    %v838 = vld [vmem:[#allocation12 + $0x48] sm:$0xff]
    %v839 = vld [vmem:[#allocation12 + $0x50] sm:$0xff]
    %v840 = vld [vmem:[#allocation12 + $0x58] sm:$0xff]
    %v841 = vld [vmem:[#allocation12 + $0x60] sm:$0xff]
    %v842 = vld [vmem:[#allocation12 + $0x68] sm:$0xff]
    %v843 = vld [vmem:[#allocation12 + $0x70] sm:$0xff]
    %v844 = vld [vmem:[#allocation12 + $0x78] sm:$0xff]
    %v845 = vld [vmem:[#allocation12 + $0x80] sm:$0xff]
    %v846 = vld [vmem:[#allocation12 + $0x88] sm:$0xff]
    %v847 = vld [vmem:[#allocation12 + $0x90] sm:$0xff]
    %v848 = vld [vmem:[#allocation12 + $0x98] sm:$0xff]
    %v849 = vld [vmem:[#allocation12 + $0xa0] sm:$0xff]
    %v850 = vld [vmem:[#allocation12 + $0xa8] sm:$0xff]
    %v851 = vld [vmem:[#allocation12 + $0xb0] sm:$0xff]
    %v852 = vld [vmem:[#allocation12 + $0xb8] sm:$0xff]
    %v853 = vld [vmem:[#allocation12 + $0xc0] sm:$0xff]
    %v854 = vld [vmem:[#allocation12 + $0xc8] sm:$0xff]
    %v855 = vld [vmem:[#allocation12 + $0xd0] sm:$0xff]
    %v856 = vld [vmem:[#allocation12 + $0xd8] sm:$0xff]
    %v857 = vld [vmem:[#allocation12 + $0xe0] sm:$0xff]
    %v858 = vld [vmem:[#allocation12 + $0xe8] sm:$0xff]
    %v859 = vld [vmem:[#allocation12 + $0xf0] sm:$0xff]
    %v860 = vld [vmem:[#allocation12 + $0xf8] sm:$0xff]
    %v861 = vld [vmem:[#allocation12 + $0x100] sm:$0xff]
    %v862 = vld [vmem:[#allocation12 + $0x108] sm:$0xff]
    %v863 = vld [vmem:[#allocation12 + $0x110] sm:$0xff]
    %v864 = vld [vmem:[#allocation12 + $0x118] sm:$0xff]
    %v865 = vld [vmem:[#allocation12 + $0x120] sm:$0xff]
    %v866 = vld [vmem:[#allocation12 + $0x128] sm:$0xff]
    %v867 = vld [vmem:[#allocation12 + $0x130] sm:$0xff]
    %v868 = vld [vmem:[#allocation12 + $0x138] sm:$0xff]
    %v869 = vld [vmem:[#allocation12 + $0x140] sm:$0xff]
    %v870 = vld [vmem:[#allocation12 + $0x148] sm:$0xff]
    %v871 = vld [vmem:[#allocation12 + $0x150] sm:$0xff]
    %v872 = vld [vmem:[#allocation12 + $0x158] sm:$0xff]
    %v873 = vld [vmem:[#allocation12 + $0x160] sm:$0xff]
    %v874 = vld [vmem:[#allocation12 + $0x168] sm:$0xff]
    %v875 = vld [vmem:[#allocation12 + $0x170] sm:$0xff]
    %v876 = vld [vmem:[#allocation12 + $0x178] sm:$0xff]
    %v877 = vpack.c.bf16 %v830, %v829
    %v878 = vpack.c.bf16 %v832, %v831
    %v879 = vpack.c.bf16 %v834, %v833
    %v880 = vpack.c.bf16 %v836, %v835
    %v881 = vpack.c.bf16 %v838, %v837
    %v882 = vpack.c.bf16 %v840, %v839
    %v883 = vpack.c.bf16 %v842, %v841
    %v884 = vpack.c.bf16 %v844, %v843
    %v885 = vpack.c.bf16 %v846, %v845
    %v886 = vpack.c.bf16 %v848, %v847
    %v887 = vpack.c.bf16 %v850, %v849
    %v888 = vpack.c.bf16 %v852, %v851
    %v889 = vpack.c.bf16 %v854, %v853
    %v890 = vpack.c.bf16 %v856, %v855
    %v891 = vpack.c.bf16 %v858, %v857
    %v892 = vpack.c.bf16 %v860, %v859
    %v893 = vpack.c.bf16 %v862, %v861
    %v894 = vpack.c.bf16 %v864, %v863
    %v895 = vpack.c.bf16 %v866, %v865
    %v896 = vpack.c.bf16 %v868, %v867
    %v897 = vpack.c.bf16 %v870, %v869
    %v898 = vpack.c.bf16 %v872, %v871
    %v899 = vpack.c.bf16 %v874, %v873
    %v900 = vpack.c.bf16 %v876, %v875
    %901 = vmatprep.subr.bf16.mxu0 0
    %902 = vmatpush1.bf16.msra.mxu0 %v877
    %903 = vmatprep.subr.bf16.mxu0 0
    %904 = vmatpush1.bf16.msra.mxu0 %v878
    %905 = vmatprep.subr.bf16.mxu0 0
    %906 = vmatpush1.bf16.msra.mxu0 %v879
    %907 = vmatprep.subr.bf16.mxu0 0
    %908 = vmatpush1.bf16.msra.mxu0 %v880
    %909 = vmatprep.subr.bf16.mxu0 0
    %910 = vmatpush1.bf16.msra.mxu0 %v881
    %911 = vmatprep.subr.bf16.mxu0 0
    %912 = vmatpush1.bf16.msra.mxu0 %v882
    %913 = vmatprep.subr.bf16.mxu0 0
    %914 = vmatpush1.bf16.msra.mxu0 %v883
    %915 = vmatprep.subr.bf16.mxu0 0
    %916 = vmatpush1.bf16.msra.mxu0 %v884
    %917 = vmatprep.subr.bf16.mxu0 0
    %918 = vmatpush1.bf16.msra.mxu0 %v885
    %919 = vmatprep.subr.bf16.mxu0 0
    %920 = vmatpush1.bf16.msra.mxu0 %v886
    %921 = vmatprep.subr.bf16.mxu0 0
    %922 = vmatpush1.bf16.msra.mxu0 %v887
    %923 = vmatprep.subr.bf16.mxu0 0
    %924 = vmatpush1.bf16.msra.mxu0 %v888
    %925 = vmatprep.subr.bf16.mxu0 0
    %926 = vmatpush1.bf16.msra.mxu0 %v889
    %927 = vmatprep.subr.bf16.mxu0 0
    %928 = vmatpush1.bf16.msra.mxu0 %v890
    %929 = vmatprep.subr.bf16.mxu0 0
    %930 = vmatpush1.bf16.msra.mxu0 %v891
    %931 = vmatprep.subr.bf16.mxu0 0
    %932 = vmatpush1.bf16.msra.mxu0 %v892
    %933 = vmatprep.mubr.bf16.mxu0 %v827
    %934 = vmatmul.mubr.bf16.gmra.mrb[0].mxu0 %v826
    %v935 = vpop.f32.mrb[0].mxu0
    %v936 = vadd.f32 0.0, %v935
    %v937 = vpop.f32.mrb[0].mxu0
    %v938 = vpop.f32.mrb[0].mxu0
    %v939 = vpop.f32.mrb[0].mxu0
    %940 = vdwg.mxu0
    %941 = vmatprep.subr.bf16.mxu0 0
    %942 = vmatpush1.bf16.msra.mxu0 %v893
    %943 = vmatprep.subr.bf16.mxu0 0
    %944 = vmatpush1.bf16.msra.mxu0 %v894
    %945 = vmatprep.subr.bf16.mxu0 0
    %946 = vmatpush1.bf16.msra.mxu0 %v895
    %947 = vmatprep.subr.bf16.mxu0 0
    %948 = vmatpush1.bf16.msra.mxu0 %v896
    %949 = vmatprep.subr.bf16.mxu0 0
    %950 = vmatpush1.bf16.msra.mxu0 %v897
    %951 = vmatprep.subr.bf16.mxu0 0
    %952 = vmatpush1.bf16.msra.mxu0 %v898
    %953 = vmatprep.subr.bf16.mxu0 0
    %954 = vmatpush1.bf16.msra.mxu0 %v899
    %955 = vmatprep.subr.bf16.mxu0 0
    %956 = vmatpush1.bf16.msra.mxu0 %v900
    %957 = vmatprep.subr.bf16.mxu0 0
    %958 = vmatpush1.bf16.msra.mxu0 0
    %959 = vmatprep.subr.bf16.mxu0 0
    %960 = vmatpush1.bf16.msra.mxu0 0
    %961 = vmatprep.subr.bf16.mxu0 0
    %962 = vmatpush1.bf16.msra.mxu0 0
    %963 = vmatprep.subr.bf16.mxu0 0
    %964 = vmatpush1.bf16.msra.mxu0 0
    %965 = vmatprep.subr.bf16.mxu0 0
    %966 = vmatpush1.bf16.msra.mxu0 0
    %967 = vmatprep.subr.bf16.mxu0 0
    %968 = vmatpush1.bf16.msra.mxu0 0
    %969 = vmatprep.subr.bf16.mxu0 0
    %970 = vmatpush1.bf16.msra.mxu0 0
    %971 = vmatprep.subr.bf16.mxu0 0
    %972 = vmatpush1.bf16.msra.mxu0 0
    %973 = vmatprep.mubr.bf16.mxu0 0
    %974 = vmatmul.mubr.bf16.gmra.mrb[0].mxu0 %v828
    %v975 = vpop.f32.mrb[0].mxu0
    %v976 = vadd.f32 %v936, %v975
    %v977 = vpop.f32.mrb[0].mxu0
    %v978 = vpop.f32.mrb[0].mxu0
    %v979 = vpop.f32.mrb[0].mxu0
    %980 = vdwg.mxu0
    %981 = vst [vmem:[#allocation15] sm:$0xf] %v976
    // Predicated region
    $region50: #{dg_net_forward.3} parent=1 // pred_check
      _
    $region51: #{dg_net_forward.3} parent=1 // pred_check_branch
      %983 = sbr.rel (0) target = $region53
    $region52: #{dg_net_forward.3} parent=1 // pred_region
      %s985 = ssub.s32 192, 192
      %986 = vsyncadd [#allocation4], %s985
      %s988 = sshll.u32 [#allocation14], 4
      %s989 = int_to_ptr.vmem [resolvable:$true] %s988
      %991 = dma.vmem_to_hbm [thread:$0]  %s989, 192, %s6, [#allocation4]
    $region53: #{dg_net_forward.3} parent=1 // pred_fallthru
      _
    // Predicated region
    $region54: #{dg_net_forward.3} parent=1 // pred_check
      _
    $region55: #{dg_net_forward.3} parent=1 // pred_check_branch
      %993 = sbr.rel (0) target = $region57
    $region56: #{dg_net_forward.3} parent=1 // pred_region
      %s995 = ssub.s32 64, 64
      %996 = vsyncadd [#allocation16], %s995
      %s998 = sshll.u32 [#allocation15], 4
      %s999 = int_to_ptr.vmem [resolvable:$true] %s998
      %1001 = dma.vmem_to_hbm [thread:$0]  %s999, 64, %s7, [#allocation16]
    $region57: #{dg_net_forward.3} parent=1 // pred_fallthru
      _
    // Predicated region
    $region58: #{dg_net_forward.3} parent=1 // pred_check
      _
    $region59: #{dg_net_forward.3} parent=1 // pred_check_branch
      %1003 = sbr.rel (0) target = $region61
    $region60: #{dg_net_forward.3} parent=1 // pred_region
      %s1005 = ssub.s32 16, 16
      %1006 = vsyncadd [#allocation5], %s1005
      %1009 = dma.smem_to_hbm [#allocation17], 16, %s8, [#allocation5]
    $region61: #{dg_net_forward.3} parent=1 // pred_fallthru
      _
    // Predicated region
    $region62: #{dg_net_forward.3} parent=1 // pred_check
      _
    $region63: #{dg_net_forward.3} parent=1 // pred_check_branch
      %1011 = sbr.rel (0) target = $region65
    $region64: #{dg_net_forward.3} parent=1 // pred_region
      %1012 = dma.done [#allocation4], 192
    $region65: #{dg_net_forward.3} parent=1 // pred_fallthru
      _
    // Predicated region
    $region66: #{dg_net_forward.3} parent=1 // pred_check
      _
    $region67: #{dg_net_forward.3} parent=1 // pred_check_branch
      %1014 = sbr.rel (0) target = $region69
    $region68: #{dg_net_forward.3} parent=1 // pred_region
      %1015 = dma.done [#allocation16], 64
    $region69: #{dg_net_forward.3} parent=1 // pred_fallthru
      _
    // Predicated region
    $region70: #{dg_net_forward.3} parent=1 // pred_check
      _
    $region71: #{dg_net_forward.3} parent=1 // pred_check_branch
      %1017 = sbr.rel (0) target = $region73
    $region72: #{dg_net_forward.3} parent=1 // pred_region
      %1018 = dma.done [#allocation5], 16
    $region73: #{dg_net_forward.3} parent=1 // pred_fallthru
      _
    %1019 = sfence
    %1020 = vsyncpa [#allocation3], 1
    %1021 = vsyncpa [#allocation7], 1
    %1022 = vsyncpa [#allocation10], 1
    %1023 = vsyncpa [#allocation13], 1
    %1024 = vsyncpa [#allocation4], 1
    %1025 = vsyncpa [#allocation16], 1
    %1026 = vsyncpa [#allocation5], 1

</llo_original>
